<compile_context>
chip_gen: v5e
topology: v5e:2x2
jax: 0.10.0
libtpu: 0.0.40
codegen_flags: <defaults>
</compile_context>

<pallas_src>
import functools

import jax
import jax.numpy as jnp
from jax.experimental import pallas as pl
from jax.experimental.pallas import tpu as pltpu

INPUT_SIZE = 1000
H1, H2, H3, OUT = 512, 256, 128, 1
BN_EPS = 1e-5


def mlp_kernel(x_ref,
               w1_ref, t1_ref,
               w2_ref, t2_ref,
               w3_ref, t3_ref,
               w4_ref, b4_ref,
               o_ref):
    # Layer 1: fc1 (BN scale folded into w1 columns) -> +shift -> relu.
    # x arrives as f32 straight from HBM; the bf16 cast is in-kernel VPU work.
    h = jnp.dot(x_ref[...].astype(jnp.bfloat16), w1_ref[...],
                preferred_element_type=jnp.float32)
    h = jnp.maximum(h + t1_ref[...], 0.0)
    # Layer 2: fc2 -> +shift -> relu      (dropout = identity at inference)
    h = jnp.dot(h.astype(jnp.bfloat16), w2_ref[...],
                preferred_element_type=jnp.float32)
    h = jnp.maximum(h + t2_ref[...], 0.0)
    # Layer 3: fc3 -> +shift -> relu
    h = jnp.dot(h.astype(jnp.bfloat16), w3_ref[...],
                preferred_element_type=jnp.float32)
    h = jnp.maximum(h + t3_ref[...], 0.0)
    # Layer 4: single output column -> elementwise mul + lane reduction (no padded
    # MXU pass, 4 B/row writeback instead of 512 B/row).
    y = jnp.sum(h * w4_ref[...], axis=-1, keepdims=True) + b4_ref[...]
    o_ref[...] = y.astype(o_ref.dtype)


def _choose_tm(batch, target_tiles=2, cap=512):
    """~B/target_tiles rows per tile (>=2 tiles keeps both v7x TCs busy), multiple of 8, <= cap."""
    tm = -(-batch // target_tiles)          # ceil div
    tm = ((tm + 7) // 8) * 8                # sublane alignment
    return max(8, min(cap, tm))


@functools.partial(jax.jit, static_argnames=("tm",))
def robust_gap_predictor(x, params, tm=None):
    """x: (B, INPUT_SIZE) float32.  params: dict of folded parameters.  Returns (B, 1) f32."""
    B = x.shape[0]
    if tm is None:
        tm = _choose_tm(B)

    weight_args = (
        params["w1"], params["t1"],
        params["w2"], params["t2"],
        params["w3"], params["t3"],
        params["w4"], params["b4"],
    )
    # Full-shape blocks with constant index_maps: fetched from HBM once, pinned in
    # VMEM across batch tiles.
    pinned = lambda a: pl.BlockSpec(a.shape, lambda i: (0, 0))

    return pl.pallas_call(
        mlp_kernel,
        out_shape=jax.ShapeDtypeStruct((B, OUT), jnp.float32),
        grid=(pl.cdiv(B, tm),),
        in_specs=[pl.BlockSpec((tm, INPUT_SIZE), lambda i: (i, 0))]
                 + [pinned(a) for a in weight_args],
        out_specs=pl.BlockSpec((tm, OUT), lambda i: (i, 0)),
        compiler_params=pltpu.CompilerParams(
            dimension_semantics=("parallel",),
            vmem_limit_bytes=32 << 20,
        ),
    )(x, *weight_args)


def make_params(key):
    """Deterministic parameter init (shapes/semantics match the PyTorch module, eval mode)."""
    ks = jax.random.split(key, 20)

    def linear(kw, kb, n_in, n_out):
        bound = 1.0 / jnp.sqrt(jnp.float32(n_in))
        w = jax.random.uniform(kw, (n_in, n_out), jnp.float32, -bound, bound)
        b = jax.random.uniform(kb, (1, n_out), jnp.float32, -bound, bound)
        return w, b

    def bn(kg, kb, km, kv, n):
        gamma = 1.0 + 0.1 * jax.random.normal(kg, (1, n), jnp.float32)
        beta = 0.1 * jax.random.normal(kb, (1, n), jnp.float32)
        mean = 0.1 * jax.random.normal(km, (1, n), jnp.float32)
        var = 1.0 + 0.1 * jax.random.uniform(kv, (1, n), jnp.float32)
        return gamma, beta, mean, var

    w1, b1 = linear(ks[0], ks[1], INPUT_SIZE, H1)
    w2, b2 = linear(ks[2], ks[3], H1, H2)
    w3, b3 = linear(ks[4], ks[5], H2, H3)
    w4, b4 = linear(ks[6], ks[7], H3, OUT)
    bn1 = bn(ks[8], ks[9], ks[10], ks[11], H1)
    bn2 = bn(ks[12], ks[13], ks[14], ks[15], H2)
    bn3 = bn(ks[16], ks[17], ks[18], ks[19], H3)

    def fold(w, bias, gamma, beta, mean, var):
        # relu(BN(xW + b)) == relu(x (W*s) + t),  s = gamma/sqrt(var+eps),
        # t = beta + (b - mean)*s.  Scale folded into weight columns, cast once to bf16.
        s = gamma / jnp.sqrt(var + BN_EPS)
        t = beta + (bias - mean) * s
        return (w * s).astype(jnp.bfloat16), t

    w1f, t1 = fold(w1, b1, *bn1)
    w2f, t2 = fold(w2, b2, *bn2)
    w3f, t3 = fold(w3, b3, *bn3)

    return dict(w1=w1f, t1=t1,
                w2=w2f, t2=t2,
                w3=w3f, t3=t3,
                w4=w4.reshape(1, H3),   # (128,1) -> (1,128) row; stays f32 (VPU op)
                b4=b4.reshape(1, 1))


def reference_forward(x, p):
    """Pure-JAX reference with identical folded-BN / bf16-weight, f32-accumulate numerics."""
    h = jnp.dot(x.astype(jnp.bfloat16), p["w1"], preferred_element_type=jnp.float32)
    h = jnp.maximum(h + p["t1"], 0.0)
    h = jnp.dot(h.astype(jnp.bfloat16), p["w2"], preferred_element_type=jnp.float32)
    h = jnp.maximum(h + p["t2"], 0.0)
    h = jnp.dot(h.astype(jnp.bfloat16), p["w3"], preferred_element_type=jnp.float32)
    h = jnp.maximum(h + p["t3"], 0.0)
    return jnp.sum(h * p["w4"], axis=-1, keepdims=True) + p["b4"]


if __name__ == "__main__":
    key = jax.random.PRNGKey(0)
    kx, kp = jax.random.split(key)
    B = 8
    x = jax.random.normal(kx, (B, INPUT_SIZE), jnp.float32)
    params = make_params(kp)

    out = robust_gap_predictor(x, params)
    out = jax.block_until_ready(out)

    ref = reference_forward(x, params)
    assert out.shape == (B, OUT), f"bad output shape {out.shape}"
    assert jnp.allclose(out, ref, atol=2e-3, rtol=2e-3), \
        f"max abs err {jnp.max(jnp.abs(out - ref))}"
    print("KERNEL_OK")
</pallas_src>

<mosaic_0001>
module attributes {stable_mosaic.version = 11 : i64} {
  func.func @mlp_kernel(%arg0: i32, %arg1: memref<8x1000xf32, #tpu.memory_space<vmem>>, %arg2: memref<1000x512xbf16, #tpu.memory_space<vmem>>, %arg3: memref<1x512xf32, #tpu.memory_space<vmem>>, %arg4: memref<512x256xbf16, #tpu.memory_space<vmem>>, %arg5: memref<1x256xf32, #tpu.memory_space<vmem>>, %arg6: memref<256x128xbf16, #tpu.memory_space<vmem>>, %arg7: memref<1x128xf32, #tpu.memory_space<vmem>>, %arg8: memref<1x128xf32, #tpu.memory_space<vmem>>, %arg9: memref<1x1xf32, #tpu.memory_space<vmem>>, %arg10: memref<8x1xf32, #tpu.memory_space<vmem>>) attributes {dimension_semantics = [#tpu.dimension_semantics<parallel>], iteration_bounds = array<i64: 1>, scalar_prefetch = 0 : i64, scratch_operands = 0 : i64, tpu.core_type = #tpu.core_type<tc>, window_params = [{transform_indices = @transform_0, window_bounds = array<i64: 8, 1000>}, {pipeline_mode = #tpu.pipeline_mode<synchronous>, transform_indices = @transform_1, window_bounds = array<i64: 1000, 512>}, {pipeline_mode = #tpu.pipeline_mode<synchronous>, transform_indices = @transform_2, window_bounds = array<i64: 1, 512>}, {pipeline_mode = #tpu.pipeline_mode<synchronous>, transform_indices = @transform_3, window_bounds = array<i64: 512, 256>}, {pipeline_mode = #tpu.pipeline_mode<synchronous>, transform_indices = @transform_4, window_bounds = array<i64: 1, 256>}, {pipeline_mode = #tpu.pipeline_mode<synchronous>, transform_indices = @transform_5, window_bounds = array<i64: 256, 128>}, {pipeline_mode = #tpu.pipeline_mode<synchronous>, transform_indices = @transform_6, window_bounds = array<i64: 1, 128>}, {pipeline_mode = #tpu.pipeline_mode<synchronous>, transform_indices = @transform_7, window_bounds = array<i64: 1, 128>}, {pipeline_mode = #tpu.pipeline_mode<synchronous>, transform_indices = @transform_8, window_bounds = array<i64: 1, 1>}, {transform_indices = @transform_9, window_bounds = array<i64: 8, 1>}]} {
    %c0 = arith.constant 0 : index
    %c0_0 = arith.constant 0 : index
    %0 = vector.load %arg1[%c0, %c0_0] : memref<8x1000xf32, #tpu.memory_space<vmem>>, vector<8x1000xf32>
    %1 = arith.truncf %0 : vector<8x1000xf32> to vector<8x1000xbf16>
    %c0_1 = arith.constant 0 : index
    %c0_2 = arith.constant 0 : index
    %2 = vector.load %arg2[%c0_1, %c0_2] : memref<1000x512xbf16, #tpu.memory_space<vmem>>, vector<1000x512xbf16>
    %cst = arith.constant dense<0.000000e+00> : vector<8x512xf32>
    %3 = tpu.matmul %1, %2, %cst {dimension_numbers = #tpu.dot_dimension_numbers<[1], [0], [0], [1], [0, 0, 1, 1], [], []>} : vector<8x1000xbf16>, vector<1000x512xbf16>, vector<8x512xf32> -> vector<8x512xf32>
    %c0_3 = arith.constant 0 : index
    %c0_4 = arith.constant 0 : index
    %4 = vector.load %arg3[%c0_3, %c0_4] : memref<1x512xf32, #tpu.memory_space<vmem>>, vector<1x512xf32>
    %5 = vector.broadcast %4 : vector<1x512xf32> to vector<8x512xf32>
    %6 = arith.addf %3, %5 : vector<8x512xf32>
    %cst_5 = arith.constant 0.000000e+00 : f32
    %7 = vector.broadcast %cst_5 : f32 to vector<8x512xf32>
    %8 = arith.maximumf %6, %7 : vector<8x512xf32>
    %9 = arith.truncf %8 : vector<8x512xf32> to vector<8x512xbf16>
    %c0_6 = arith.constant 0 : index
    %c0_7 = arith.constant 0 : index
    %10 = vector.load %arg4[%c0_6, %c0_7] : memref<512x256xbf16, #tpu.memory_space<vmem>>, vector<512x256xbf16>
    %cst_8 = arith.constant dense<0.000000e+00> : vector<8x256xf32>
    %11 = tpu.matmul %9, %10, %cst_8 {dimension_numbers = #tpu.dot_dimension_numbers<[1], [0], [0], [1], [0, 0, 1, 1], [], []>} : vector<8x512xbf16>, vector<512x256xbf16>, vector<8x256xf32> -> vector<8x256xf32>
    %c0_9 = arith.constant 0 : index
    %c0_10 = arith.constant 0 : index
    %12 = vector.load %arg5[%c0_9, %c0_10] : memref<1x256xf32, #tpu.memory_space<vmem>>, vector<1x256xf32>
    %13 = vector.broadcast %12 : vector<1x256xf32> to vector<8x256xf32>
    %14 = arith.addf %11, %13 : vector<8x256xf32>
    %cst_11 = arith.constant 0.000000e+00 : f32
    %15 = vector.broadcast %cst_11 : f32 to vector<8x256xf32>
    %16 = arith.maximumf %14, %15 : vector<8x256xf32>
    %17 = arith.truncf %16 : vector<8x256xf32> to vector<8x256xbf16>
    %c0_12 = arith.constant 0 : index
    %c0_13 = arith.constant 0 : index
    %18 = vector.load %arg6[%c0_12, %c0_13] : memref<256x128xbf16, #tpu.memory_space<vmem>>, vector<256x128xbf16>
    %cst_14 = arith.constant dense<0.000000e+00> : vector<8x128xf32>
    %19 = tpu.matmul %17, %18, %cst_14 {dimension_numbers = #tpu.dot_dimension_numbers<[1], [0], [0], [1], [0, 0, 1, 1], [], []>} : vector<8x256xbf16>, vector<256x128xbf16>, vector<8x128xf32> -> vector<8x128xf32>
    %c0_15 = arith.constant 0 : index
    %c0_16 = arith.constant 0 : index
    %20 = vector.load %arg7[%c0_15, %c0_16] : memref<1x128xf32, #tpu.memory_space<vmem>>, vector<1x128xf32>
    %21 = vector.broadcast %20 : vector<1x128xf32> to vector<8x128xf32>
    %22 = arith.addf %19, %21 : vector<8x128xf32>
    %cst_17 = arith.constant 0.000000e+00 : f32
    %23 = vector.broadcast %cst_17 : f32 to vector<8x128xf32>
    %24 = arith.maximumf %22, %23 : vector<8x128xf32>
    %c0_18 = arith.constant 0 : index
    %c0_19 = arith.constant 0 : index
    %25 = vector.load %arg8[%c0_18, %c0_19] : memref<1x128xf32, #tpu.memory_space<vmem>>, vector<1x128xf32>
    %26 = vector.broadcast %25 : vector<1x128xf32> to vector<8x128xf32>
    %27 = arith.mulf %24, %26 : vector<8x128xf32>
    %cst_20 = arith.constant dense<0.000000e+00> : vector<8xf32>
    %28 = vector.multi_reduction <add>, %27, %cst_20 [1] : vector<8x128xf32> to vector<8xf32>
    %29 = vector.shape_cast %28 : vector<8xf32> to vector<8x1xf32>
    %c0_21 = arith.constant 0 : index
    %c0_22 = arith.constant 0 : index
    %30 = vector.load %arg9[%c0_21, %c0_22] : memref<1x1xf32, #tpu.memory_space<vmem>>, vector<1x1xf32>
    %31 = vector.broadcast %30 : vector<1x1xf32> to vector<8x1xf32>
    %32 = arith.addf %29, %31 : vector<8x1xf32>
    %c0_23 = arith.constant 0 : index
    %c0_24 = arith.constant 0 : index
    %33 = vector.load %arg10[%c0_23, %c0_24] : memref<8x1xf32, #tpu.memory_space<vmem>>, vector<8x1xf32>
    tpu.vector_store %arg10[%c0_23, %c0_24], %32 {strides = array<i32>} : memref<8x1xf32, #tpu.memory_space<vmem>>, vector<8x1xf32>,
    return
  }
  func.func @transform_0(%arg0: i32) -> (i32, i32) {
    %c0_i32 = arith.constant 0 : i32
    %c0_i32_0 = arith.constant 0 : i32
    return %arg0, %c0_i32 : i32, i32
  }
  func.func @transform_1(%arg0: i32) -> (i32, i32) {
    %c0_i32 = arith.constant 0 : i32
    %c0_i32_0 = arith.constant 0 : i32
    %c0_i32_1 = arith.constant 0 : i32
    return %c0_i32, %c0_i32_0 : i32, i32
  }
  func.func @transform_2(%arg0: i32) -> (i32, i32) {
    %c0_i32 = arith.constant 0 : i32
    %c0_i32_0 = arith.constant 0 : i32
    %c0_i32_1 = arith.constant 0 : i32
    return %c0_i32, %c0_i32_0 : i32, i32
  }
  func.func @transform_3(%arg0: i32) -> (i32, i32) {
    %c0_i32 = arith.constant 0 : i32
    %c0_i32_0 = arith.constant 0 : i32
    %c0_i32_1 = arith.constant 0 : i32
    return %c0_i32, %c0_i32_0 : i32, i32
  }
  func.func @transform_4(%arg0: i32) -> (i32, i32) {
    %c0_i32 = arith.constant 0 : i32
    %c0_i32_0 = arith.constant 0 : i32
    %c0_i32_1 = arith.constant 0 : i32
    return %c0_i32, %c0_i32_0 : i32, i32
  }
  func.func @transform_5(%arg0: i32) -> (i32, i32) {
    %c0_i32 = arith.constant 0 : i32
    %c0_i32_0 = arith.constant 0 : i32
    %c0_i32_1 = arith.constant 0 : i32
    return %c0_i32, %c0_i32_0 : i32, i32
  }
  func.func @transform_6(%arg0: i32) -> (i32, i32) {
    %c0_i32 = arith.constant 0 : i32
    %c0_i32_0 = arith.constant 0 : i32
    %c0_i32_1 = arith.constant 0 : i32
    return %c0_i32, %c0_i32_0 : i32, i32
  }
  func.func @transform_7(%arg0: i32) -> (i32, i32) {
    %c0_i32 = arith.constant 0 : i32
    %c0_i32_0 = arith.constant 0 : i32
    %c0_i32_1 = arith.constant 0 : i32
    return %c0_i32, %c0_i32_0 : i32, i32
  }
  func.func @transform_8(%arg0: i32) -> (i32, i32) {
    %c0_i32 = arith.constant 0 : i32
    %c0_i32_0 = arith.constant 0 : i32
    %c0_i32_1 = arith.constant 0 : i32
    return %c0_i32, %c0_i32_0 : i32, i32
  }
  func.func @transform_9(%arg0: i32) -> (i32, i32) {
    %c0_i32 = arith.constant 0 : i32
    %c0_i32_0 = arith.constant 0 : i32
    return %arg0, %c0_i32 : i32, i32
  }
}

</mosaic_0001>

<llo_original>
// kernel: robust_gap_predictor.1
$region0: #{robust_gap_predictor.1}
  #allocation0 [shape = 'u32[]', space=smem, size = 0x4, offset = 0x4, fixed_abs, tag = 'smem constant byte address 0x4 - core index']
  #allocation1 [shape = 'u32[72,128]{1,0:T(1,128)}', space=vmem, size = 0x9000, scoped, tag = 'internal scratch']
  #allocation2 [shape = 'f32[1,1]{1,0:T(1,128)S(1)}', space=vmem, size = 0x200, scoped, tag = 'scoped memory for robust_gap_predictor.1']
  %s0 = inlined_call_operand.hbm [shape: f32[8,1000], index: 0, kind: input, shape index: {}]
  %s1 = inlined_call_operand.hbm [shape: bf16[1000,512], index: 1, kind: input, shape index: {}]
  %s2 = inlined_call_operand.hbm [shape: f32[1,512], index: 2, kind: input, shape index: {}]
  %s3 = inlined_call_operand.hbm [shape: bf16[512,256], index: 3, kind: input, shape index: {}]
  %s4 = inlined_call_operand.vmem [shape: f32[1,256], index: 4, kind: input, shape index: {}]
  %s5 = inlined_call_operand.hbm [shape: bf16[256,128], index: 5, kind: input, shape index: {}]
  %s6 = inlined_call_operand.vmem [shape: f32[1,128], index: 6, kind: input, shape index: {}]
  %s7 = inlined_call_operand.vmem [shape: f32[1,128], index: 7, kind: input, shape index: {}]
  %s8 = inlined_call_operand.<no memory space> [shape: f32[1,1], index: 8, kind: input, shape index: {}]
  %s9 = inlined_call_operand.vmem [shape: f32[8,1], index: 9, kind: output, shape index: {}]
  %s10 = sld [smem:[#allocation0]]
  $region66: #{robust_gap_predictor.1} parent=0
    _
  %s12 = ssub.s32 1, %s10
  %s13 = scalar_select 0, %s12, %s10
  %v14 = vstv %s8
  %15 = vst [vmem:[#allocation2] sm:$0x1] %v14
  $region1: #{robust_gap_predictor.1} parent=0
    #allocation3 [shape = 'u8[32768]{0}', space=vmem, size = 0x8000, scoped, tag = 'input window, operand 0, single buffered']
    #allocation4 [shape = 's32[1]{0}', space=sflag, size = 0x4, scoped, tag = 'scoped memory for robust_gap_predictor.1']
    #allocation5 [shape = 'u8[1024000]{0}', space=vmem, size = 0xfa000, scoped, tag = 'input window, operand 1, single buffered']
    #allocation6 [shape = 's32[1]{0}', space=sflag, size = 0x4, scoped, tag = 'scoped memory for robust_gap_predictor.1']
    #allocation7 [shape = 'u8[2048]{0}', space=vmem, size = 0x800, scoped, tag = 'input window, operand 2, single buffered']
    #allocation8 [shape = 'u8[262144]{0}', space=vmem, size = 0x40000, scoped, tag = 'input window, operand 3, single buffered']
    #allocation9 [shape = 's32[1]{0}', space=sflag, size = 0x4, scoped, tag = 'scoped memory for robust_gap_predictor.1']
    #allocation10 [shape = 'u8[65536]{0}', space=vmem, size = 0x10000, scoped, tag = 'input window, operand 5, single buffered']
    %16 = vsyncpa [#allocation4], 0
    %17 = vsyncpa [#allocation6], 0
    %18 = vsyncpa [#allocation9], 0
    // Predicated region
    $region2: #{robust_gap_predictor.1} parent=1 // pred_check
      _
    $region3: #{robust_gap_predictor.1} parent=1 // pred_check_branch
      %20 = sbr.rel (0) target = $region5
    $region4: #{robust_gap_predictor.1} parent=1 // pred_region
      %22 = vsyncadd [#allocation4], 0
      %s24 = sshll.u32 %s0, 4
      %s25 = int_to_ptr.hbm [resolvable:$true] %s24
      %s26 = sshll.u32 [#allocation3], 4
      %s27 = int_to_ptr.vmem [resolvable:$true] %s26
      %29 = dma.hbm_to_vmem [thread:$0]  %s25, 1024, %s27, [#allocation4]
    $region5: #{robust_gap_predictor.1} parent=1 // pred_fallthru
      _
    // Predicated region
    $region6: #{robust_gap_predictor.1} parent=1 // pred_check
      _
    $region7: #{robust_gap_predictor.1} parent=1 // pred_check_branch
      %31 = sbr.rel (0) target = $region9
    $region8: #{robust_gap_predictor.1} parent=1 // pred_region
      %33 = vsyncadd [#allocation6], 0
      %s34 = sshll.u32 %s1, 4
      %s35 = int_to_ptr.hbm [resolvable:$true] %s34
      %s36 = sshll.u32 [#allocation5], 4
      %s37 = int_to_ptr.vmem [resolvable:$true] %s36
      %42 = dma.hbm_to_vmem [thread:$0]  %s35, 32000, %s37, [#allocation6], 256, 256, 16
    $region9: #{robust_gap_predictor.1} parent=1 // pred_fallthru
      _
    // Predicated region
    $region10: #{robust_gap_predictor.1} parent=1 // pred_check
      _
    $region11: #{robust_gap_predictor.1} parent=1 // pred_check_branch
      %44 = sbr.rel (0) target = $region13
    $region12: #{robust_gap_predictor.1} parent=1 // pred_region
      %46 = vsyncadd [#allocation6], 0
      %s48 = sshll.u32 %s2, 4
      %s49 = int_to_ptr.hbm [resolvable:$true] %s48
      %s50 = sshll.u32 [#allocation7], 4
      %s51 = int_to_ptr.vmem [resolvable:$true] %s50
      %53 = dma.hbm_to_vmem [thread:$0]  %s49, 64, %s51, [#allocation6]
    $region13: #{robust_gap_predictor.1} parent=1 // pred_fallthru
      _
    // Predicated region
    $region14: #{robust_gap_predictor.1} parent=1 // pred_check
      _
    $region15: #{robust_gap_predictor.1} parent=1 // pred_check_branch
      %55 = sbr.rel (0) target = $region17
    $region16: #{robust_gap_predictor.1} parent=1 // pred_region
      %57 = vsyncadd [#allocation9], 0
      %s58 = sshll.u32 %s3, 4
      %s59 = int_to_ptr.hbm [resolvable:$true] %s58
      %s60 = sshll.u32 [#allocation8], 4
      %s61 = int_to_ptr.vmem [resolvable:$true] %s60
      %66 = dma.hbm_to_vmem [thread:$0]  %s59, 8192, %s61, [#allocation9], 128, 128, 8
    $region17: #{robust_gap_predictor.1} parent=1 // pred_fallthru
      _
    // Predicated region
    $region18: #{robust_gap_predictor.1} parent=1 // pred_check
      _
    $region19: #{robust_gap_predictor.1} parent=1 // pred_check_branch
      %68 = sbr.rel (0) target = $region21
    $region20: #{robust_gap_predictor.1} parent=1 // pred_region
      _
    $region21: #{robust_gap_predictor.1} parent=1 // pred_fallthru
      _
    // Predicated region
    $region22: #{robust_gap_predictor.1} parent=1 // pred_check
      _
    $region23: #{robust_gap_predictor.1} parent=1 // pred_check_branch
      %70 = sbr.rel (0) target = $region25
    $region24: #{robust_gap_predictor.1} parent=1 // pred_region
      %72 = vsyncadd [#allocation9], 0
      %s73 = sshll.u32 %s5, 4
      %s74 = int_to_ptr.hbm [resolvable:$true] %s73
      %s75 = sshll.u32 [#allocation10], 4
      %s76 = int_to_ptr.vmem [resolvable:$true] %s75
      %81 = dma.hbm_to_vmem [thread:$0]  %s74, 2048, %s76, [#allocation9], 64, 64, 4
    $region25: #{robust_gap_predictor.1} parent=1 // pred_fallthru
      _
    // Predicated region
    $region26: #{robust_gap_predictor.1} parent=1 // pred_check
      _
    $region27: #{robust_gap_predictor.1} parent=1 // pred_check_branch
      %83 = sbr.rel (0) target = $region29
    $region28: #{robust_gap_predictor.1} parent=1 // pred_region
      _
    $region29: #{robust_gap_predictor.1} parent=1 // pred_fallthru
      _
    // Predicated region
    $region30: #{robust_gap_predictor.1} parent=1 // pred_check
      _
    $region31: #{robust_gap_predictor.1} parent=1 // pred_check_branch
      %85 = sbr.rel (0) target = $region33
    $region32: #{robust_gap_predictor.1} parent=1 // pred_region
      _
    $region33: #{robust_gap_predictor.1} parent=1 // pred_fallthru
      _
    // Predicated region
    $region34: #{robust_gap_predictor.1} parent=1 // pred_check
      _
    $region35: #{robust_gap_predictor.1} parent=1 // pred_check_branch
      %87 = sbr.rel (0) target = $region37
    $region36: #{robust_gap_predictor.1} parent=1 // pred_region
      _
    $region37: #{robust_gap_predictor.1} parent=1 // pred_fallthru
      _
    // Predicated region
    $region38: #{robust_gap_predictor.1} parent=1 // pred_check
      _
    $region39: #{robust_gap_predictor.1} parent=1 // pred_check_branch
      %89 = sbr.rel (0) target = $region41
    $region40: #{robust_gap_predictor.1} parent=1 // pred_region
      %91 = dma.done [#allocation4], 1024
    $region41: #{robust_gap_predictor.1} parent=1 // pred_fallthru
      _
    // Predicated region
    $region42: #{robust_gap_predictor.1} parent=1 // pred_check
      _
    $region43: #{robust_gap_predictor.1} parent=1 // pred_check_branch
      %93 = sbr.rel (0) target = $region45
    $region44: #{robust_gap_predictor.1} parent=1 // pred_region
      %95 = dma.done [#allocation6], 32000
    $region45: #{robust_gap_predictor.1} parent=1 // pred_fallthru
      _
    // Predicated region
    $region46: #{robust_gap_predictor.1} parent=1 // pred_check
      _
    $region47: #{robust_gap_predictor.1} parent=1 // pred_check_branch
      %97 = sbr.rel (0) target = $region49
    $region48: #{robust_gap_predictor.1} parent=1 // pred_region
      %99 = dma.done [#allocation6], 64
    $region49: #{robust_gap_predictor.1} parent=1 // pred_fallthru
      _
    // Predicated region
    $region50: #{robust_gap_predictor.1} parent=1 // pred_check
      _
    $region51: #{robust_gap_predictor.1} parent=1 // pred_check_branch
      %101 = sbr.rel (0) target = $region53
    $region52: #{robust_gap_predictor.1} parent=1 // pred_region
      %103 = dma.done [#allocation9], 8192
    $region53: #{robust_gap_predictor.1} parent=1 // pred_fallthru
      _
    // Predicated region
    $region54: #{robust_gap_predictor.1} parent=1 // pred_check
      _
    $region55: #{robust_gap_predictor.1} parent=1 // pred_check_branch
      %105 = sbr.rel (0) target = $region57
    $region56: #{robust_gap_predictor.1} parent=1 // pred_region
      %107 = dma.done [#allocation9], 2048
    $region57: #{robust_gap_predictor.1} parent=1 // pred_fallthru
      _
    %v109 = vld [vmem:[#allocation3] sm:$0xff]
    %v110 = vld [vmem:[#allocation3 + $0x8] sm:$0xff]
    %v111 = vld [vmem:[#allocation3 + $0x10] sm:$0xff]
    %v112 = vld [vmem:[#allocation3 + $0x18] sm:$0xff]
    %v113 = vld [vmem:[#allocation3 + $0x20] sm:$0xff]
    %v114 = vld [vmem:[#allocation3 + $0x28] sm:$0xff]
    %v115 = vld [vmem:[#allocation3 + $0x30] sm:$0xff]
    %v116 = vld [vmem:[#allocation3 + $0x38] sm:$0xff]
    %v117 = vpack.c.bf16 %v109, %v109
    %v118 = vpack.c.bf16 %v110, %v110
    %v119 = vpack.c.bf16 %v111, %v111
    %v120 = vpack.c.bf16 %v112, %v112
    %v121 = vpack.c.bf16 %v113, %v113
    %v122 = vpack.c.bf16 %v114, %v114
    %v123 = vpack.c.bf16 %v115, %v115
    %v124 = vpack.c.bf16 %v116, %v116
    %v125 = vld [vmem:[#allocation5] sm:$0xff]
    %v126 = vld [vmem:[#allocation5 + $0x8] sm:$0xff]
    %v127 = vld [vmem:[#allocation5 + $0x10] sm:$0xff]
    %v128 = vld [vmem:[#allocation5 + $0x18] sm:$0xff]
    %v129 = vld [vmem:[#allocation5 + $0x20] sm:$0xff]
    %v130 = vld [vmem:[#allocation5 + $0x28] sm:$0xff]
    %v131 = vld [vmem:[#allocation5 + $0x30] sm:$0xff]
    %v132 = vld [vmem:[#allocation5 + $0x38] sm:$0xff]
    %v133 = vld [vmem:[#allocation5 + $0x40] sm:$0xff]
    %v134 = vld [vmem:[#allocation5 + $0x48] sm:$0xff]
    %v135 = vld [vmem:[#allocation5 + $0x50] sm:$0xff]
    %v136 = vld [vmem:[#allocation5 + $0x58] sm:$0xff]
    %v137 = vld [vmem:[#allocation5 + $0x60] sm:$0xff]
    %v138 = vld [vmem:[#allocation5 + $0x68] sm:$0xff]
    %v139 = vld [vmem:[#allocation5 + $0x70] sm:$0xff]
    %v140 = vld [vmem:[#allocation5 + $0x78] sm:$0xff]
    %v141 = vld [vmem:[#allocation5 + $0x80] sm:$0xff]
    %v142 = vld [vmem:[#allocation5 + $0x88] sm:$0xff]
    %v143 = vld [vmem:[#allocation5 + $0x90] sm:$0xff]
    %v144 = vld [vmem:[#allocation5 + $0x98] sm:$0xff]
    %v145 = vld [vmem:[#allocation5 + $0xa0] sm:$0xff]
    %v146 = vld [vmem:[#allocation5 + $0xa8] sm:$0xff]
    %v147 = vld [vmem:[#allocation5 + $0xb0] sm:$0xff]
    %v148 = vld [vmem:[#allocation5 + $0xb8] sm:$0xff]
    %v149 = vld [vmem:[#allocation5 + $0xc0] sm:$0xff]
    %v150 = vld [vmem:[#allocation5 + $0xc8] sm:$0xff]
    %v151 = vld [vmem:[#allocation5 + $0xd0] sm:$0xff]
    %v152 = vld [vmem:[#allocation5 + $0xd8] sm:$0xff]
    %v153 = vld [vmem:[#allocation5 + $0xe0] sm:$0xff]
    %v154 = vld [vmem:[#allocation5 + $0xe8] sm:$0xff]
    %v155 = vld [vmem:[#allocation5 + $0xf0] sm:$0xff]
    %v156 = vld [vmem:[#allocation5 + $0xf8] sm:$0xff]
    %v157 = vld [vmem:[#allocation5 + $0x100] sm:$0xff]
    %v158 = vld [vmem:[#allocation5 + $0x108] sm:$0xff]
    %v159 = vld [vmem:[#allocation5 + $0x110] sm:$0xff]
    %v160 = vld [vmem:[#allocation5 + $0x118] sm:$0xff]
    %v161 = vld [vmem:[#allocation5 + $0x120] sm:$0xff]
    %v162 = vld [vmem:[#allocation5 + $0x128] sm:$0xff]
    %v163 = vld [vmem:[#allocation5 + $0x130] sm:$0xff]
    %v164 = vld [vmem:[#allocation5 + $0x138] sm:$0xff]
    %v165 = vld [vmem:[#allocation5 + $0x140] sm:$0xff]
    %v166 = vld [vmem:[#allocation5 + $0x148] sm:$0xff]
    %v167 = vld [vmem:[#allocation5 + $0x150] sm:$0xff]
    %v168 = vld [vmem:[#allocation5 + $0x158] sm:$0xff]
    %v169 = vld [vmem:[#allocation5 + $0x160] sm:$0xff]
    %v170 = vld [vmem:[#allocation5 + $0x168] sm:$0xff]
    %v171 = vld [vmem:[#allocation5 + $0x170] sm:$0xff]
    %v172 = vld [vmem:[#allocation5 + $0x178] sm:$0xff]
    %v173 = vld [vmem:[#allocation5 + $0x180] sm:$0xff]
    %v174 = vld [vmem:[#allocation5 + $0x188] sm:$0xff]
    %v175 = vld [vmem:[#allocation5 + $0x190] sm:$0xff]
    %v176 = vld [vmem:[#allocation5 + $0x198] sm:$0xff]
    %v177 = vld [vmem:[#allocation5 + $0x1a0] sm:$0xff]
    %v178 = vld [vmem:[#allocation5 + $0x1a8] sm:$0xff]
    %v179 = vld [vmem:[#allocation5 + $0x1b0] sm:$0xff]
    %v180 = vld [vmem:[#allocation5 + $0x1b8] sm:$0xff]
    %v181 = vld [vmem:[#allocation5 + $0x1c0] sm:$0xff]
    %v182 = vld [vmem:[#allocation5 + $0x1c8] sm:$0xff]
    %v183 = vld [vmem:[#allocation5 + $0x1d0] sm:$0xff]
    %v184 = vld [vmem:[#allocation5 + $0x1d8] sm:$0xff]
    %v185 = vld [vmem:[#allocation5 + $0x1e0] sm:$0xff]
    %v186 = vld [vmem:[#allocation5 + $0x1e8] sm:$0xff]
    %v187 = vld [vmem:[#allocation5 + $0x1f0] sm:$0xff]
    %v188 = vld [vmem:[#allocation5 + $0x1f8] sm:$0xff]
    %v189 = vld [vmem:[#allocation5 + $0x200] sm:$0xff]
    %v190 = vld [vmem:[#allocation5 + $0x208] sm:$0xff]
    %v191 = vld [vmem:[#allocation5 + $0x210] sm:$0xff]
    %v192 = vld [vmem:[#allocation5 + $0x218] sm:$0xff]
    %v193 = vld [vmem:[#allocation5 + $0x220] sm:$0xff]
    %v194 = vld [vmem:[#allocation5 + $0x228] sm:$0xff]
    %v195 = vld [vmem:[#allocation5 + $0x230] sm:$0xff]
    %v196 = vld [vmem:[#allocation5 + $0x238] sm:$0xff]
    %v197 = vld [vmem:[#allocation5 + $0x240] sm:$0xff]
    %v198 = vld [vmem:[#allocation5 + $0x248] sm:$0xff]
    %v199 = vld [vmem:[#allocation5 + $0x250] sm:$0xff]
    %v200 = vld [vmem:[#allocation5 + $0x258] sm:$0xff]
    %v201 = vld [vmem:[#allocation5 + $0x260] sm:$0xff]
    %v202 = vld [vmem:[#allocation5 + $0x268] sm:$0xff]
    %v203 = vld [vmem:[#allocation5 + $0x270] sm:$0xff]
    %v204 = vld [vmem:[#allocation5 + $0x278] sm:$0xff]
    %v205 = vld [vmem:[#allocation5 + $0x280] sm:$0xff]
    %v206 = vld [vmem:[#allocation5 + $0x288] sm:$0xff]
    %v207 = vld [vmem:[#allocation5 + $0x290] sm:$0xff]
    %v208 = vld [vmem:[#allocation5 + $0x298] sm:$0xff]
    %v209 = vld [vmem:[#allocation5 + $0x2a0] sm:$0xff]
    %v210 = vld [vmem:[#allocation5 + $0x2a8] sm:$0xff]
    %v211 = vld [vmem:[#allocation5 + $0x2b0] sm:$0xff]
    %v212 = vld [vmem:[#allocation5 + $0x2b8] sm:$0xff]
    %v213 = vld [vmem:[#allocation5 + $0x2c0] sm:$0xff]
    %v214 = vld [vmem:[#allocation5 + $0x2c8] sm:$0xff]
    %v215 = vld [vmem:[#allocation5 + $0x2d0] sm:$0xff]
    %v216 = vld [vmem:[#allocation5 + $0x2d8] sm:$0xff]
    %v217 = vld [vmem:[#allocation5 + $0x2e0] sm:$0xff]
    %v218 = vld [vmem:[#allocation5 + $0x2e8] sm:$0xff]
    %v219 = vld [vmem:[#allocation5 + $0x2f0] sm:$0xff]
    %v220 = vld [vmem:[#allocation5 + $0x2f8] sm:$0xff]
    %v221 = vld [vmem:[#allocation5 + $0x300] sm:$0xff]
    %v222 = vld [vmem:[#allocation5 + $0x308] sm:$0xff]
    %v223 = vld [vmem:[#allocation5 + $0x310] sm:$0xff]
    %v224 = vld [vmem:[#allocation5 + $0x318] sm:$0xff]
    %v225 = vld [vmem:[#allocation5 + $0x320] sm:$0xff]
    %v226 = vld [vmem:[#allocation5 + $0x328] sm:$0xff]
    %v227 = vld [vmem:[#allocation5 + $0x330] sm:$0xff]
    %v228 = vld [vmem:[#allocation5 + $0x338] sm:$0xff]
    %v229 = vld [vmem:[#allocation5 + $0x340] sm:$0xff]
    %v230 = vld [vmem:[#allocation5 + $0x348] sm:$0xff]
    %v231 = vld [vmem:[#allocation5 + $0x350] sm:$0xff]
    %v232 = vld [vmem:[#allocation5 + $0x358] sm:$0xff]
    %v233 = vld [vmem:[#allocation5 + $0x360] sm:$0xff]
    %v234 = vld [vmem:[#allocation5 + $0x368] sm:$0xff]
    %v235 = vld [vmem:[#allocation5 + $0x370] sm:$0xff]
    %v236 = vld [vmem:[#allocation5 + $0x378] sm:$0xff]
    %v237 = vld [vmem:[#allocation5 + $0x380] sm:$0xff]
    %v238 = vld [vmem:[#allocation5 + $0x388] sm:$0xff]
    %v239 = vld [vmem:[#allocation5 + $0x390] sm:$0xff]
    %v240 = vld [vmem:[#allocation5 + $0x398] sm:$0xff]
    %v241 = vld [vmem:[#allocation5 + $0x3a0] sm:$0xff]
    %v242 = vld [vmem:[#allocation5 + $0x3a8] sm:$0xff]
    %v243 = vld [vmem:[#allocation5 + $0x3b0] sm:$0xff]
    %v244 = vld [vmem:[#allocation5 + $0x3b8] sm:$0xff]
    %v245 = vld [vmem:[#allocation5 + $0x3c0] sm:$0xff]
    %v246 = vld [vmem:[#allocation5 + $0x3c8] sm:$0xff]
    %v247 = vld [vmem:[#allocation5 + $0x3d0] sm:$0xff]
    %v248 = vld [vmem:[#allocation5 + $0x3d8] sm:$0xff]
    %v249 = vld [vmem:[#allocation5 + $0x3e0] sm:$0xff]
    %v250 = vld [vmem:[#allocation5 + $0x3e8] sm:$0xff]
    %v251 = vld [vmem:[#allocation5 + $0x3f0] sm:$0xff]
    %v252 = vld [vmem:[#allocation5 + $0x3f8] sm:$0xff]
    %v253 = vld [vmem:[#allocation5 + $0x400] sm:$0xff]
    %v254 = vld [vmem:[#allocation5 + $0x408] sm:$0xff]
    %v255 = vld [vmem:[#allocation5 + $0x410] sm:$0xff]
    %v256 = vld [vmem:[#allocation5 + $0x418] sm:$0xff]
    %v257 = vld [vmem:[#allocation5 + $0x420] sm:$0xff]
    %v258 = vld [vmem:[#allocation5 + $0x428] sm:$0xff]
    %v259 = vld [vmem:[#allocation5 + $0x430] sm:$0xff]
    %v260 = vld [vmem:[#allocation5 + $0x438] sm:$0xff]
    %v261 = vld [vmem:[#allocation5 + $0x440] sm:$0xff]
    %v262 = vld [vmem:[#allocation5 + $0x448] sm:$0xff]
    %v263 = vld [vmem:[#allocation5 + $0x450] sm:$0xff]
    %v264 = vld [vmem:[#allocation5 + $0x458] sm:$0xff]
    %v265 = vld [vmem:[#allocation5 + $0x460] sm:$0xff]
    %v266 = vld [vmem:[#allocation5 + $0x468] sm:$0xff]
    %v267 = vld [vmem:[#allocation5 + $0x470] sm:$0xff]
    %v268 = vld [vmem:[#allocation5 + $0x478] sm:$0xff]
    %v269 = vld [vmem:[#allocation5 + $0x480] sm:$0xff]
    %v270 = vld [vmem:[#allocation5 + $0x488] sm:$0xff]
    %v271 = vld [vmem:[#allocation5 + $0x490] sm:$0xff]
    %v272 = vld [vmem:[#allocation5 + $0x498] sm:$0xff]
    %v273 = vld [vmem:[#allocation5 + $0x4a0] sm:$0xff]
    %v274 = vld [vmem:[#allocation5 + $0x4a8] sm:$0xff]
    %v275 = vld [vmem:[#allocation5 + $0x4b0] sm:$0xff]
    %v276 = vld [vmem:[#allocation5 + $0x4b8] sm:$0xff]
    %v277 = vld [vmem:[#allocation5 + $0x4c0] sm:$0xff]
    %v278 = vld [vmem:[#allocation5 + $0x4c8] sm:$0xff]
    %v279 = vld [vmem:[#allocation5 + $0x4d0] sm:$0xff]
    %v280 = vld [vmem:[#allocation5 + $0x4d8] sm:$0xff]
    %v281 = vld [vmem:[#allocation5 + $0x4e0] sm:$0xff]
    %v282 = vld [vmem:[#allocation5 + $0x4e8] sm:$0xff]
    %v283 = vld [vmem:[#allocation5 + $0x4f0] sm:$0xff]
    %v284 = vld [vmem:[#allocation5 + $0x4f8] sm:$0xff]
    %v285 = vld [vmem:[#allocation5 + $0x500] sm:$0xff]
    %v286 = vld [vmem:[#allocation5 + $0x508] sm:$0xff]
    %v287 = vld [vmem:[#allocation5 + $0x510] sm:$0xff]
    %v288 = vld [vmem:[#allocation5 + $0x518] sm:$0xff]
    %v289 = vld [vmem:[#allocation5 + $0x520] sm:$0xff]
    %v290 = vld [vmem:[#allocation5 + $0x528] sm:$0xff]
    %v291 = vld [vmem:[#allocation5 + $0x530] sm:$0xff]
    %v292 = vld [vmem:[#allocation5 + $0x538] sm:$0xff]
    %v293 = vld [vmem:[#allocation5 + $0x540] sm:$0xff]
    %v294 = vld [vmem:[#allocation5 + $0x548] sm:$0xff]
    %v295 = vld [vmem:[#allocation5 + $0x550] sm:$0xff]
    %v296 = vld [vmem:[#allocation5 + $0x558] sm:$0xff]
    %v297 = vld [vmem:[#allocation5 + $0x560] sm:$0xff]
    %v298 = vld [vmem:[#allocation5 + $0x568] sm:$0xff]
    %v299 = vld [vmem:[#allocation5 + $0x570] sm:$0xff]
    %v300 = vld [vmem:[#allocation5 + $0x578] sm:$0xff]
    %v301 = vld [vmem:[#allocation5 + $0x580] sm:$0xff]
    %v302 = vld [vmem:[#allocation5 + $0x588] sm:$0xff]
    %v303 = vld [vmem:[#allocation5 + $0x590] sm:$0xff]
    %v304 = vld [vmem:[#allocation5 + $0x598] sm:$0xff]
    %v305 = vld [vmem:[#allocation5 + $0x5a0] sm:$0xff]
    %v306 = vld [vmem:[#allocation5 + $0x5a8] sm:$0xff]
    %v307 = vld [vmem:[#allocation5 + $0x5b0] sm:$0xff]
    %v308 = vld [vmem:[#allocation5 + $0x5b8] sm:$0xff]
    %v309 = vld [vmem:[#allocation5 + $0x5c0] sm:$0xff]
    %v310 = vld [vmem:[#allocation5 + $0x5c8] sm:$0xff]
    %v311 = vld [vmem:[#allocation5 + $0x5d0] sm:$0xff]
    %v312 = vld [vmem:[#allocation5 + $0x5d8] sm:$0xff]
    %v313 = vld [vmem:[#allocation5 + $0x5e0] sm:$0xff]
    %v314 = vld [vmem:[#allocation5 + $0x5e8] sm:$0xff]
    %v315 = vld [vmem:[#allocation5 + $0x5f0] sm:$0xff]
    %v316 = vld [vmem:[#allocation5 + $0x5f8] sm:$0xff]
    %v317 = vld [vmem:[#allocation5 + $0x600] sm:$0xff]
    %v318 = vld [vmem:[#allocation5 + $0x608] sm:$0xff]
    %v319 = vld [vmem:[#allocation5 + $0x610] sm:$0xff]
    %v320 = vld [vmem:[#allocation5 + $0x618] sm:$0xff]
    %v321 = vld [vmem:[#allocation5 + $0x620] sm:$0xff]
    %v322 = vld [vmem:[#allocation5 + $0x628] sm:$0xff]
    %v323 = vld [vmem:[#allocation5 + $0x630] sm:$0xff]
    %v324 = vld [vmem:[#allocation5 + $0x638] sm:$0xff]
    %v325 = vld [vmem:[#allocation5 + $0x640] sm:$0xff]
    %v326 = vld [vmem:[#allocation5 + $0x648] sm:$0xff]
    %v327 = vld [vmem:[#allocation5 + $0x650] sm:$0xff]
    %v328 = vld [vmem:[#allocation5 + $0x658] sm:$0xff]
    %v329 = vld [vmem:[#allocation5 + $0x660] sm:$0xff]
    %v330 = vld [vmem:[#allocation5 + $0x668] sm:$0xff]
    %v331 = vld [vmem:[#allocation5 + $0x670] sm:$0xff]
    %v332 = vld [vmem:[#allocation5 + $0x678] sm:$0xff]
    %v333 = vld [vmem:[#allocation5 + $0x680] sm:$0xff]
    %v334 = vld [vmem:[#allocation5 + $0x688] sm:$0xff]
    %v335 = vld [vmem:[#allocation5 + $0x690] sm:$0xff]
    %v336 = vld [vmem:[#allocation5 + $0x698] sm:$0xff]
    %v337 = vld [vmem:[#allocation5 + $0x6a0] sm:$0xff]
    %v338 = vld [vmem:[#allocation5 + $0x6a8] sm:$0xff]
    %v339 = vld [vmem:[#allocation5 + $0x6b0] sm:$0xff]
    %v340 = vld [vmem:[#allocation5 + $0x6b8] sm:$0xff]
    %v341 = vld [vmem:[#allocation5 + $0x6c0] sm:$0xff]
    %v342 = vld [vmem:[#allocation5 + $0x6c8] sm:$0xff]
    %v343 = vld [vmem:[#allocation5 + $0x6d0] sm:$0xff]
    %v344 = vld [vmem:[#allocation5 + $0x6d8] sm:$0xff]
    %v345 = vld [vmem:[#allocation5 + $0x6e0] sm:$0xff]
    %v346 = vld [vmem:[#allocation5 + $0x6e8] sm:$0xff]
    %v347 = vld [vmem:[#allocation5 + $0x6f0] sm:$0xff]
    %v348 = vld [vmem:[#allocation5 + $0x6f8] sm:$0xff]
    %v349 = vld [vmem:[#allocation5 + $0x700] sm:$0xff]
    %v350 = vld [vmem:[#allocation5 + $0x708] sm:$0xff]
    %v351 = vld [vmem:[#allocation5 + $0x710] sm:$0xff]
    %v352 = vld [vmem:[#allocation5 + $0x718] sm:$0xff]
    %v353 = vld [vmem:[#allocation5 + $0x720] sm:$0xff]
    %v354 = vld [vmem:[#allocation5 + $0x728] sm:$0xff]
    %v355 = vld [vmem:[#allocation5 + $0x730] sm:$0xff]
    %v356 = vld [vmem:[#allocation5 + $0x738] sm:$0xff]
    %v357 = vld [vmem:[#allocation5 + $0x740] sm:$0xff]
    %v358 = vld [vmem:[#allocation5 + $0x748] sm:$0xff]
    %v359 = vld [vmem:[#allocation5 + $0x750] sm:$0xff]
    %v360 = vld [vmem:[#allocation5 + $0x758] sm:$0xff]
    %v361 = vld [vmem:[#allocation5 + $0x760] sm:$0xff]
    %v362 = vld [vmem:[#allocation5 + $0x768] sm:$0xff]
    %v363 = vld [vmem:[#allocation5 + $0x770] sm:$0xff]
    %v364 = vld [vmem:[#allocation5 + $0x778] sm:$0xff]
    %v365 = vld [vmem:[#allocation5 + $0x780] sm:$0xff]
    %v366 = vld [vmem:[#allocation5 + $0x788] sm:$0xff]
    %v367 = vld [vmem:[#allocation5 + $0x790] sm:$0xff]
    %v368 = vld [vmem:[#allocation5 + $0x798] sm:$0xff]
    %v369 = vld [vmem:[#allocation5 + $0x7a0] sm:$0xff]
    %v370 = vld [vmem:[#allocation5 + $0x7a8] sm:$0xff]
    %v371 = vld [vmem:[#allocation5 + $0x7b0] sm:$0xff]
    %v372 = vld [vmem:[#allocation5 + $0x7b8] sm:$0xff]
    %v373 = vld [vmem:[#allocation5 + $0x7c0] sm:$0xff]
    %v374 = vld [vmem:[#allocation5 + $0x7c8] sm:$0xff]
    %v375 = vld [vmem:[#allocation7] sm:$0xf]
    %v377 = vperm.slane %v375, 0
    %v378 = vperm.slane %v375, 1
    %v379 = vperm.slane %v375, 2
    %v380 = vperm.slane %v375, 3
    %v635 = vunpack.c.l.b16 %v125
    %v636 = vunpack.c.h.b16 %v125
    %v637 = vunpack.c.l.b16 %v126
    %v638 = vunpack.c.h.b16 %v126
    %v639 = vunpack.c.l.b16 %v127
    %v640 = vunpack.c.h.b16 %v127
    %v641 = vunpack.c.l.b16 %v128
    %v642 = vunpack.c.h.b16 %v128
    %v643 = vunpack.c.l.b16 %v129
    %v644 = vunpack.c.h.b16 %v129
    %v645 = vunpack.c.l.b16 %v130
    %v646 = vunpack.c.h.b16 %v130
    %v647 = vunpack.c.l.b16 %v131
    %v648 = vunpack.c.h.b16 %v131
    %v649 = vunpack.c.l.b16 %v132
    %v650 = vunpack.c.h.b16 %v132
    %v651 = vunpack.c.l.b16 %v133
    %v652 = vunpack.c.h.b16 %v133
    %v653 = vunpack.c.l.b16 %v134
    %v654 = vunpack.c.h.b16 %v134
    %v655 = vunpack.c.l.b16 %v135
    %v656 = vunpack.c.h.b16 %v135
    %v657 = vunpack.c.l.b16 %v136
    %v658 = vunpack.c.h.b16 %v136
    %v659 = vunpack.c.l.b16 %v137
    %v660 = vunpack.c.h.b16 %v137
    %v661 = vunpack.c.l.b16 %v138
    %v662 = vunpack.c.h.b16 %v138
    %v663 = vunpack.c.l.b16 %v139
    %v664 = vunpack.c.h.b16 %v139
    %v665 = vunpack.c.l.b16 %v140
    %v666 = vunpack.c.h.b16 %v140
    %v667 = vunpack.c.l.b16 %v141
    %v668 = vunpack.c.h.b16 %v141
    %v669 = vunpack.c.l.b16 %v142
    %v670 = vunpack.c.h.b16 %v142
    %v671 = vunpack.c.l.b16 %v143
    %v672 = vunpack.c.h.b16 %v143
    %v673 = vunpack.c.l.b16 %v144
    %v674 = vunpack.c.h.b16 %v144
    %v675 = vunpack.c.l.b16 %v145
    %v676 = vunpack.c.h.b16 %v145
    %v677 = vunpack.c.l.b16 %v146
    %v678 = vunpack.c.h.b16 %v146
    %v679 = vunpack.c.l.b16 %v147
    %v680 = vunpack.c.h.b16 %v147
    %v681 = vunpack.c.l.b16 %v148
    %v682 = vunpack.c.h.b16 %v148
    %v683 = vunpack.c.l.b16 %v149
    %v684 = vunpack.c.h.b16 %v149
    %v685 = vunpack.c.l.b16 %v150
    %v686 = vunpack.c.h.b16 %v150
    %v687 = vunpack.c.l.b16 %v151
    %v688 = vunpack.c.h.b16 %v151
    %v689 = vunpack.c.l.b16 %v152
    %v690 = vunpack.c.h.b16 %v152
    %v691 = vunpack.c.l.b16 %v153
    %v692 = vunpack.c.h.b16 %v153
    %v693 = vunpack.c.l.b16 %v154
    %v694 = vunpack.c.h.b16 %v154
    %v695 = vunpack.c.l.b16 %v155
    %v696 = vunpack.c.h.b16 %v155
    %v697 = vunpack.c.l.b16 %v156
    %v698 = vunpack.c.h.b16 %v156
    %v699 = vunpack.c.l.b16 %v157
    %v700 = vunpack.c.h.b16 %v157
    %v701 = vunpack.c.l.b16 %v158
    %v702 = vunpack.c.h.b16 %v158
    %v703 = vunpack.c.l.b16 %v159
    %v704 = vunpack.c.h.b16 %v159
    %v705 = vunpack.c.l.b16 %v160
    %v706 = vunpack.c.h.b16 %v160
    %v707 = vunpack.c.l.b16 %v161
    %v708 = vunpack.c.h.b16 %v161
    %v709 = vunpack.c.l.b16 %v162
    %v710 = vunpack.c.h.b16 %v162
    %v711 = vunpack.c.l.b16 %v163
    %v712 = vunpack.c.h.b16 %v163
    %v713 = vunpack.c.l.b16 %v164
    %v714 = vunpack.c.h.b16 %v164
    %v715 = vunpack.c.l.b16 %v165
    %v716 = vunpack.c.h.b16 %v165
    %v717 = vunpack.c.l.b16 %v166
    %v718 = vunpack.c.h.b16 %v166
    %v719 = vunpack.c.l.b16 %v167
    %v720 = vunpack.c.h.b16 %v167
    %v721 = vunpack.c.l.b16 %v168
    %v722 = vunpack.c.h.b16 %v168
    %v723 = vunpack.c.l.b16 %v169
    %v724 = vunpack.c.h.b16 %v169
    %v725 = vunpack.c.l.b16 %v170
    %v726 = vunpack.c.h.b16 %v170
    %v727 = vunpack.c.l.b16 %v171
    %v728 = vunpack.c.h.b16 %v171
    %v729 = vunpack.c.l.b16 %v172
    %v730 = vunpack.c.h.b16 %v172
    %v731 = vunpack.c.l.b16 %v173
    %v732 = vunpack.c.h.b16 %v173
    %v733 = vunpack.c.l.b16 %v174
    %v734 = vunpack.c.h.b16 %v174
    %v735 = vunpack.c.l.b16 %v175
    %v736 = vunpack.c.h.b16 %v175
    %v737 = vunpack.c.l.b16 %v176
    %v738 = vunpack.c.h.b16 %v176
    %v739 = vunpack.c.l.b16 %v177
    %v740 = vunpack.c.h.b16 %v177
    %v741 = vunpack.c.l.b16 %v178
    %v742 = vunpack.c.h.b16 %v178
    %v743 = vunpack.c.l.b16 %v179
    %v744 = vunpack.c.h.b16 %v179
    %v745 = vunpack.c.l.b16 %v180
    %v746 = vunpack.c.h.b16 %v180
    %v747 = vunpack.c.l.b16 %v181
    %v748 = vunpack.c.h.b16 %v181
    %v749 = vunpack.c.l.b16 %v182
    %v750 = vunpack.c.h.b16 %v182
    %v751 = vunpack.c.l.b16 %v183
    %v752 = vunpack.c.h.b16 %v183
    %v753 = vunpack.c.l.b16 %v184
    %v754 = vunpack.c.h.b16 %v184
    %v755 = vunpack.c.l.b16 %v185
    %v756 = vunpack.c.h.b16 %v185
    %v757 = vunpack.c.l.b16 %v186
    %v758 = vunpack.c.h.b16 %v186
    %v759 = vunpack.c.l.b16 %v187
    %v760 = vunpack.c.h.b16 %v187
    %v761 = vunpack.c.l.b16 %v188
    %v762 = vunpack.c.h.b16 %v188
    %v763 = vunpack.c.l.b16 %v189
    %v764 = vunpack.c.h.b16 %v189
    %v765 = vunpack.c.l.b16 %v190
    %v766 = vunpack.c.h.b16 %v190
    %v767 = vunpack.c.l.b16 %v191
    %v768 = vunpack.c.h.b16 %v191
    %v769 = vunpack.c.l.b16 %v192
    %v770 = vunpack.c.h.b16 %v192
    %v771 = vunpack.c.l.b16 %v193
    %v772 = vunpack.c.h.b16 %v193
    %v773 = vunpack.c.l.b16 %v194
    %v774 = vunpack.c.h.b16 %v194
    %v775 = vunpack.c.l.b16 %v195
    %v776 = vunpack.c.h.b16 %v195
    %v777 = vunpack.c.l.b16 %v196
    %v778 = vunpack.c.h.b16 %v196
    %v779 = vunpack.c.l.b16 %v197
    %v780 = vunpack.c.h.b16 %v197
    %v781 = vunpack.c.l.b16 %v198
    %v782 = vunpack.c.h.b16 %v198
    %v783 = vunpack.c.l.b16 %v199
    %v784 = vunpack.c.h.b16 %v199
    %v785 = vunpack.c.l.b16 %v200
    %v786 = vunpack.c.h.b16 %v200
    %v787 = vunpack.c.l.b16 %v201
    %v788 = vunpack.c.h.b16 %v201
    %v789 = vunpack.c.l.b16 %v202
    %v790 = vunpack.c.h.b16 %v202
    %v791 = vunpack.c.l.b16 %v203
    %v792 = vunpack.c.h.b16 %v203
    %v793 = vunpack.c.l.b16 %v204
    %v794 = vunpack.c.h.b16 %v204
    %v795 = vunpack.c.l.b16 %v205
    %v796 = vunpack.c.h.b16 %v205
    %v797 = vunpack.c.l.b16 %v206
    %v798 = vunpack.c.h.b16 %v206
    %v799 = vunpack.c.l.b16 %v207
    %v800 = vunpack.c.h.b16 %v207
    %v801 = vunpack.c.l.b16 %v208
    %v802 = vunpack.c.h.b16 %v208
    %v803 = vunpack.c.l.b16 %v209
    %v804 = vunpack.c.h.b16 %v209
    %v805 = vunpack.c.l.b16 %v210
    %v806 = vunpack.c.h.b16 %v210
    %v807 = vunpack.c.l.b16 %v211
    %v808 = vunpack.c.h.b16 %v211
    %v809 = vunpack.c.l.b16 %v212
    %v810 = vunpack.c.h.b16 %v212
    %v811 = vunpack.c.l.b16 %v213
    %v812 = vunpack.c.h.b16 %v213
    %v813 = vunpack.c.l.b16 %v214
    %v814 = vunpack.c.h.b16 %v214
    %v815 = vunpack.c.l.b16 %v215
    %v816 = vunpack.c.h.b16 %v215
    %v817 = vunpack.c.l.b16 %v216
    %v818 = vunpack.c.h.b16 %v216
    %v819 = vunpack.c.l.b16 %v217
    %v820 = vunpack.c.h.b16 %v217
    %v821 = vunpack.c.l.b16 %v218
    %v822 = vunpack.c.h.b16 %v218
    %v823 = vunpack.c.l.b16 %v219
    %v824 = vunpack.c.h.b16 %v219
    %v825 = vunpack.c.l.b16 %v220
    %v826 = vunpack.c.h.b16 %v220
    %v827 = vunpack.c.l.b16 %v221
    %v828 = vunpack.c.h.b16 %v221
    %v829 = vunpack.c.l.b16 %v222
    %v830 = vunpack.c.h.b16 %v222
    %v831 = vunpack.c.l.b16 %v223
    %v832 = vunpack.c.h.b16 %v223
    %v833 = vunpack.c.l.b16 %v224
    %v834 = vunpack.c.h.b16 %v224
    %v835 = vunpack.c.l.b16 %v225
    %v836 = vunpack.c.h.b16 %v225
    %v837 = vunpack.c.l.b16 %v226
    %v838 = vunpack.c.h.b16 %v226
    %v839 = vunpack.c.l.b16 %v227
    %v840 = vunpack.c.h.b16 %v227
    %v841 = vunpack.c.l.b16 %v228
    %v842 = vunpack.c.h.b16 %v228
    %v843 = vunpack.c.l.b16 %v229
    %v844 = vunpack.c.h.b16 %v229
    %v845 = vunpack.c.l.b16 %v230
    %v846 = vunpack.c.h.b16 %v230
    %v847 = vunpack.c.l.b16 %v231
    %v848 = vunpack.c.h.b16 %v231
    %v849 = vunpack.c.l.b16 %v232
    %v850 = vunpack.c.h.b16 %v232
    %v851 = vunpack.c.l.b16 %v233
    %v852 = vunpack.c.h.b16 %v233
    %v853 = vunpack.c.l.b16 %v234
    %v854 = vunpack.c.h.b16 %v234
    %v855 = vunpack.c.l.b16 %v235
    %v856 = vunpack.c.h.b16 %v235
    %v857 = vunpack.c.l.b16 %v236
    %v858 = vunpack.c.h.b16 %v236
    %v859 = vunpack.c.l.b16 %v237
    %v860 = vunpack.c.h.b16 %v237
    %v861 = vunpack.c.l.b16 %v238
    %v862 = vunpack.c.h.b16 %v238
    %v863 = vunpack.c.l.b16 %v239
    %v864 = vunpack.c.h.b16 %v239
    %v865 = vunpack.c.l.b16 %v240
    %v866 = vunpack.c.h.b16 %v240
    %v867 = vunpack.c.l.b16 %v241
    %v868 = vunpack.c.h.b16 %v241
    %v869 = vunpack.c.l.b16 %v242
    %v870 = vunpack.c.h.b16 %v242
    %v871 = vunpack.c.l.b16 %v243
    %v872 = vunpack.c.h.b16 %v243
    %v873 = vunpack.c.l.b16 %v244
    %v874 = vunpack.c.h.b16 %v244
    %v875 = vunpack.c.l.b16 %v245
    %v876 = vunpack.c.h.b16 %v245
    %v877 = vunpack.c.l.b16 %v246
    %v878 = vunpack.c.h.b16 %v246
    %v879 = vunpack.c.l.b16 %v247
    %v880 = vunpack.c.h.b16 %v247
    %v881 = vunpack.c.l.b16 %v248
    %v882 = vunpack.c.h.b16 %v248
    %v883 = vunpack.c.l.b16 %v249
    %v884 = vunpack.c.h.b16 %v249
    %v885 = vunpack.c.l.b16 %v250
    %v886 = vunpack.c.h.b16 %v250
    %v887 = vunpack.c.l.b16 %v251
    %v888 = vunpack.c.h.b16 %v251
    %v889 = vunpack.c.l.b16 %v252
    %v890 = vunpack.c.h.b16 %v252
    %v891 = vunpack.c.l.b16 %v253
    %v892 = vunpack.c.h.b16 %v253
    %v893 = vunpack.c.l.b16 %v254
    %v894 = vunpack.c.h.b16 %v254
    %v895 = vunpack.c.l.b16 %v255
    %v896 = vunpack.c.h.b16 %v255
    %v897 = vunpack.c.l.b16 %v256
    %v898 = vunpack.c.h.b16 %v256
    %v899 = vunpack.c.l.b16 %v257
    %v900 = vunpack.c.h.b16 %v257
    %v901 = vunpack.c.l.b16 %v258
    %v902 = vunpack.c.h.b16 %v258
    %v903 = vunpack.c.l.b16 %v259
    %v904 = vunpack.c.h.b16 %v259
    %v905 = vunpack.c.l.b16 %v260
    %v906 = vunpack.c.h.b16 %v260
    %v907 = vunpack.c.l.b16 %v261
    %v908 = vunpack.c.h.b16 %v261
    %v909 = vunpack.c.l.b16 %v262
    %v910 = vunpack.c.h.b16 %v262
    %v911 = vunpack.c.l.b16 %v263
    %v912 = vunpack.c.h.b16 %v263
    %v913 = vunpack.c.l.b16 %v264
    %v914 = vunpack.c.h.b16 %v264
    %v915 = vunpack.c.l.b16 %v265
    %v916 = vunpack.c.h.b16 %v265
    %v917 = vunpack.c.l.b16 %v266
    %v918 = vunpack.c.h.b16 %v266
    %v919 = vunpack.c.l.b16 %v267
    %v920 = vunpack.c.h.b16 %v267
    %v921 = vunpack.c.l.b16 %v268
    %v922 = vunpack.c.h.b16 %v268
    %v923 = vunpack.c.l.b16 %v269
    %v924 = vunpack.c.h.b16 %v269
    %v925 = vunpack.c.l.b16 %v270
    %v926 = vunpack.c.h.b16 %v270
    %v927 = vunpack.c.l.b16 %v271
    %v928 = vunpack.c.h.b16 %v271
    %v929 = vunpack.c.l.b16 %v272
    %v930 = vunpack.c.h.b16 %v272
    %v931 = vunpack.c.l.b16 %v273
    %v932 = vunpack.c.h.b16 %v273
    %v933 = vunpack.c.l.b16 %v274
    %v934 = vunpack.c.h.b16 %v274
    %v935 = vunpack.c.l.b16 %v275
    %v936 = vunpack.c.h.b16 %v275
    %v937 = vunpack.c.l.b16 %v276
    %v938 = vunpack.c.h.b16 %v276
    %v939 = vunpack.c.l.b16 %v277
    %v940 = vunpack.c.h.b16 %v277
    %v941 = vunpack.c.l.b16 %v278
    %v942 = vunpack.c.h.b16 %v278
    %v943 = vunpack.c.l.b16 %v279
    %v944 = vunpack.c.h.b16 %v279
    %v945 = vunpack.c.l.b16 %v280
    %v946 = vunpack.c.h.b16 %v280
    %v947 = vunpack.c.l.b16 %v281
    %v948 = vunpack.c.h.b16 %v281
    %v949 = vunpack.c.l.b16 %v282
    %v950 = vunpack.c.h.b16 %v282
    %v951 = vunpack.c.l.b16 %v283
    %v952 = vunpack.c.h.b16 %v283
    %v953 = vunpack.c.l.b16 %v284
    %v954 = vunpack.c.h.b16 %v284
    %v955 = vunpack.c.l.b16 %v285
    %v956 = vunpack.c.h.b16 %v285
    %v957 = vunpack.c.l.b16 %v286
    %v958 = vunpack.c.h.b16 %v286
    %v959 = vunpack.c.l.b16 %v287
    %v960 = vunpack.c.h.b16 %v287
    %v961 = vunpack.c.l.b16 %v288
    %v962 = vunpack.c.h.b16 %v288
    %v963 = vunpack.c.l.b16 %v289
    %v964 = vunpack.c.h.b16 %v289
    %v965 = vunpack.c.l.b16 %v290
    %v966 = vunpack.c.h.b16 %v290
    %v967 = vunpack.c.l.b16 %v291
    %v968 = vunpack.c.h.b16 %v291
    %v969 = vunpack.c.l.b16 %v292
    %v970 = vunpack.c.h.b16 %v292
    %v971 = vunpack.c.l.b16 %v293
    %v972 = vunpack.c.h.b16 %v293
    %v973 = vunpack.c.l.b16 %v294
    %v974 = vunpack.c.h.b16 %v294
    %v975 = vunpack.c.l.b16 %v295
    %v976 = vunpack.c.h.b16 %v295
    %v977 = vunpack.c.l.b16 %v296
    %v978 = vunpack.c.h.b16 %v296
    %v979 = vunpack.c.l.b16 %v297
    %v980 = vunpack.c.h.b16 %v297
    %v981 = vunpack.c.l.b16 %v298
    %v982 = vunpack.c.h.b16 %v298
    %v983 = vunpack.c.l.b16 %v299
    %v984 = vunpack.c.h.b16 %v299
    %v985 = vunpack.c.l.b16 %v300
    %v986 = vunpack.c.h.b16 %v300
    %v987 = vunpack.c.l.b16 %v301
    %v988 = vunpack.c.h.b16 %v301
    %v989 = vunpack.c.l.b16 %v302
    %v990 = vunpack.c.h.b16 %v302
    %v991 = vunpack.c.l.b16 %v303
    %v992 = vunpack.c.h.b16 %v303
    %v993 = vunpack.c.l.b16 %v304
    %v994 = vunpack.c.h.b16 %v304
    %v995 = vunpack.c.l.b16 %v305
    %v996 = vunpack.c.h.b16 %v305
    %v997 = vunpack.c.l.b16 %v306
    %v998 = vunpack.c.h.b16 %v306
    %v999 = vunpack.c.l.b16 %v307
    %v1000 = vunpack.c.h.b16 %v307
    %v1001 = vunpack.c.l.b16 %v308
    %v1002 = vunpack.c.h.b16 %v308
    %v1003 = vunpack.c.l.b16 %v309
    %v1004 = vunpack.c.h.b16 %v309
    %v1005 = vunpack.c.l.b16 %v310
    %v1006 = vunpack.c.h.b16 %v310
    %v1007 = vunpack.c.l.b16 %v311
    %v1008 = vunpack.c.h.b16 %v311
    %v1009 = vunpack.c.l.b16 %v312
    %v1010 = vunpack.c.h.b16 %v312
    %v1011 = vunpack.c.l.b16 %v313
    %v1012 = vunpack.c.h.b16 %v313
    %v1013 = vunpack.c.l.b16 %v314
    %v1014 = vunpack.c.h.b16 %v314
    %v1015 = vunpack.c.l.b16 %v315
    %v1016 = vunpack.c.h.b16 %v315
    %v1017 = vunpack.c.l.b16 %v316
    %v1018 = vunpack.c.h.b16 %v316
    %v1019 = vunpack.c.l.b16 %v317
    %v1020 = vunpack.c.h.b16 %v317
    %v1021 = vunpack.c.l.b16 %v318
    %v1022 = vunpack.c.h.b16 %v318
    %v1023 = vunpack.c.l.b16 %v319
    %v1024 = vunpack.c.h.b16 %v319
    %v1025 = vunpack.c.l.b16 %v320
    %v1026 = vunpack.c.h.b16 %v320
    %v1027 = vunpack.c.l.b16 %v321
    %v1028 = vunpack.c.h.b16 %v321
    %v1029 = vunpack.c.l.b16 %v322
    %v1030 = vunpack.c.h.b16 %v322
    %v1031 = vunpack.c.l.b16 %v323
    %v1032 = vunpack.c.h.b16 %v323
    %v1033 = vunpack.c.l.b16 %v324
    %v1034 = vunpack.c.h.b16 %v324
    %v1035 = vunpack.c.l.b16 %v325
    %v1036 = vunpack.c.h.b16 %v325
    %v1037 = vunpack.c.l.b16 %v326
    %v1038 = vunpack.c.h.b16 %v326
    %v1039 = vunpack.c.l.b16 %v327
    %v1040 = vunpack.c.h.b16 %v327
    %v1041 = vunpack.c.l.b16 %v328
    %v1042 = vunpack.c.h.b16 %v328
    %v1043 = vunpack.c.l.b16 %v329
    %v1044 = vunpack.c.h.b16 %v329
    %v1045 = vunpack.c.l.b16 %v330
    %v1046 = vunpack.c.h.b16 %v330
    %v1047 = vunpack.c.l.b16 %v331
    %v1048 = vunpack.c.h.b16 %v331
    %v1049 = vunpack.c.l.b16 %v332
    %v1050 = vunpack.c.h.b16 %v332
    %v1051 = vunpack.c.l.b16 %v333
    %v1052 = vunpack.c.h.b16 %v333
    %v1053 = vunpack.c.l.b16 %v334
    %v1054 = vunpack.c.h.b16 %v334
    %v1055 = vunpack.c.l.b16 %v335
    %v1056 = vunpack.c.h.b16 %v335
    %v1057 = vunpack.c.l.b16 %v336
    %v1058 = vunpack.c.h.b16 %v336
    %v1059 = vunpack.c.l.b16 %v337
    %v1060 = vunpack.c.h.b16 %v337
    %v1061 = vunpack.c.l.b16 %v338
    %v1062 = vunpack.c.h.b16 %v338
    %v1063 = vunpack.c.l.b16 %v339
    %v1064 = vunpack.c.h.b16 %v339
    %v1065 = vunpack.c.l.b16 %v340
    %v1066 = vunpack.c.h.b16 %v340
    %v1067 = vunpack.c.l.b16 %v341
    %v1068 = vunpack.c.h.b16 %v341
    %v1069 = vunpack.c.l.b16 %v342
    %v1070 = vunpack.c.h.b16 %v342
    %v1071 = vunpack.c.l.b16 %v343
    %v1072 = vunpack.c.h.b16 %v343
    %v1073 = vunpack.c.l.b16 %v344
    %v1074 = vunpack.c.h.b16 %v344
    %v1075 = vunpack.c.l.b16 %v345
    %v1076 = vunpack.c.h.b16 %v345
    %v1077 = vunpack.c.l.b16 %v346
    %v1078 = vunpack.c.h.b16 %v346
    %v1079 = vunpack.c.l.b16 %v347
    %v1080 = vunpack.c.h.b16 %v347
    %v1081 = vunpack.c.l.b16 %v348
    %v1082 = vunpack.c.h.b16 %v348
    %v1083 = vunpack.c.l.b16 %v349
    %v1084 = vunpack.c.h.b16 %v349
    %v1085 = vunpack.c.l.b16 %v350
    %v1086 = vunpack.c.h.b16 %v350
    %v1087 = vunpack.c.l.b16 %v351
    %v1088 = vunpack.c.h.b16 %v351
    %v1089 = vunpack.c.l.b16 %v352
    %v1090 = vunpack.c.h.b16 %v352
    %v1091 = vunpack.c.l.b16 %v353
    %v1092 = vunpack.c.h.b16 %v353
    %v1093 = vunpack.c.l.b16 %v354
    %v1094 = vunpack.c.h.b16 %v354
    %v1095 = vunpack.c.l.b16 %v355
    %v1096 = vunpack.c.h.b16 %v355
    %v1097 = vunpack.c.l.b16 %v356
    %v1098 = vunpack.c.h.b16 %v356
    %v1099 = vunpack.c.l.b16 %v357
    %v1100 = vunpack.c.h.b16 %v357
    %v1101 = vunpack.c.l.b16 %v358
    %v1102 = vunpack.c.h.b16 %v358
    %v1103 = vunpack.c.l.b16 %v359
    %v1104 = vunpack.c.h.b16 %v359
    %v1105 = vunpack.c.l.b16 %v360
    %v1106 = vunpack.c.h.b16 %v360
    %v1107 = vunpack.c.l.b16 %v361
    %v1108 = vunpack.c.h.b16 %v361
    %v1109 = vunpack.c.l.b16 %v362
    %v1110 = vunpack.c.h.b16 %v362
    %v1111 = vunpack.c.l.b16 %v363
    %v1112 = vunpack.c.h.b16 %v363
    %v1113 = vunpack.c.l.b16 %v364
    %v1114 = vunpack.c.h.b16 %v364
    %v1115 = vunpack.c.l.b16 %v365
    %v1116 = vunpack.c.h.b16 %v365
    %v1117 = vunpack.c.l.b16 %v366
    %v1118 = vunpack.c.h.b16 %v366
    %v1119 = vunpack.c.l.b16 %v367
    %v1120 = vunpack.c.h.b16 %v367
    %v1121 = vunpack.c.l.b16 %v368
    %v1122 = vunpack.c.h.b16 %v368
    %v1123 = vunpack.c.l.b16 %v369
    %v1124 = vunpack.c.h.b16 %v369
    %v1125 = vunpack.c.l.b16 %v370
    %v1126 = vunpack.c.h.b16 %v370
    %v1127 = vunpack.c.l.b16 %v371
    %v1128 = vunpack.c.h.b16 %v371
    %v1129 = vunpack.c.l.b16 %v372
    %v1130 = vunpack.c.h.b16 %v372
    %v1131 = vunpack.c.l.b16 %v373
    %v1132 = vunpack.c.h.b16 %v373
    %v1133 = vunpack.c.l.b16 %v374
    %v1134 = vunpack.c.h.b16 %v374
    %v1135 = vpack.c.b16 %v639, %v635
    %v1136 = vpack.c.b16 %v640, %v636
    %v1137 = vpack.c.b16 %v641, %v637
    %v1138 = vpack.c.b16 %v642, %v638
    %v1139 = vpack.c.b16 %v647, %v643
    %v1140 = vpack.c.b16 %v648, %v644
    %v1141 = vpack.c.b16 %v649, %v645
    %v1142 = vpack.c.b16 %v650, %v646
    %v1143 = vpack.c.b16 %v655, %v651
    %v1144 = vpack.c.b16 %v656, %v652
    %v1145 = vpack.c.b16 %v657, %v653
    %v1146 = vpack.c.b16 %v658, %v654
    %v1147 = vpack.c.b16 %v663, %v659
    %v1148 = vpack.c.b16 %v664, %v660
    %v1149 = vpack.c.b16 %v665, %v661
    %v1150 = vpack.c.b16 %v666, %v662
    %v1151 = vpack.c.b16 %v671, %v667
    %v1152 = vpack.c.b16 %v672, %v668
    %v1153 = vpack.c.b16 %v673, %v669
    %v1154 = vpack.c.b16 %v674, %v670
    %v1155 = vpack.c.b16 %v679, %v675
    %v1156 = vpack.c.b16 %v680, %v676
    %v1157 = vpack.c.b16 %v681, %v677
    %v1158 = vpack.c.b16 %v682, %v678
    %v1159 = vpack.c.b16 %v687, %v683
    %v1160 = vpack.c.b16 %v688, %v684
    %v1161 = vpack.c.b16 %v689, %v685
    %v1162 = vpack.c.b16 %v690, %v686
    %v1163 = vpack.c.b16 %v695, %v691
    %v1164 = vpack.c.b16 %v696, %v692
    %v1165 = vpack.c.b16 %v697, %v693
    %v1166 = vpack.c.b16 %v698, %v694
    %v1167 = vpack.c.b16 %v703, %v699
    %v1168 = vpack.c.b16 %v704, %v700
    %v1169 = vpack.c.b16 %v705, %v701
    %v1170 = vpack.c.b16 %v706, %v702
    %v1171 = vpack.c.b16 %v711, %v707
    %v1172 = vpack.c.b16 %v712, %v708
    %v1173 = vpack.c.b16 %v713, %v709
    %v1174 = vpack.c.b16 %v714, %v710
    %v1175 = vpack.c.b16 %v719, %v715
    %v1176 = vpack.c.b16 %v720, %v716
    %v1177 = vpack.c.b16 %v721, %v717
    %v1178 = vpack.c.b16 %v722, %v718
    %v1179 = vpack.c.b16 %v727, %v723
    %v1180 = vpack.c.b16 %v728, %v724
    %v1181 = vpack.c.b16 %v729, %v725
    %v1182 = vpack.c.b16 %v730, %v726
    %v1183 = vpack.c.b16 %v735, %v731
    %v1184 = vpack.c.b16 %v736, %v732
    %v1185 = vpack.c.b16 %v737, %v733
    %v1186 = vpack.c.b16 %v738, %v734
    %v1187 = vpack.c.b16 %v743, %v739
    %v1188 = vpack.c.b16 %v744, %v740
    %v1189 = vpack.c.b16 %v745, %v741
    %v1190 = vpack.c.b16 %v746, %v742
    %v1191 = vpack.c.b16 %v751, %v747
    %v1192 = vpack.c.b16 %v752, %v748
    %v1193 = vpack.c.b16 %v753, %v749
    %v1194 = vpack.c.b16 %v754, %v750
    %v1195 = vpack.c.b16 %v759, %v755
    %v1196 = vpack.c.b16 %v760, %v756
    %v1197 = vpack.c.b16 %v761, %v757
    %v1198 = vpack.c.b16 %v762, %v758
    %v1199 = vpack.c.b16 %v767, %v763
    %v1200 = vpack.c.b16 %v768, %v764
    %v1201 = vpack.c.b16 %v769, %v765
    %v1202 = vpack.c.b16 %v770, %v766
    %v1203 = vpack.c.b16 %v775, %v771
    %v1204 = vpack.c.b16 %v776, %v772
    %v1205 = vpack.c.b16 %v777, %v773
    %v1206 = vpack.c.b16 %v778, %v774
    %v1207 = vpack.c.b16 %v783, %v779
    %v1208 = vpack.c.b16 %v784, %v780
    %v1209 = vpack.c.b16 %v785, %v781
    %v1210 = vpack.c.b16 %v786, %v782
    %v1211 = vpack.c.b16 %v791, %v787
    %v1212 = vpack.c.b16 %v792, %v788
    %v1213 = vpack.c.b16 %v793, %v789
    %v1214 = vpack.c.b16 %v794, %v790
    %v1215 = vpack.c.b16 %v799, %v795
    %v1216 = vpack.c.b16 %v800, %v796
    %v1217 = vpack.c.b16 %v801, %v797
    %v1218 = vpack.c.b16 %v802, %v798
    %v1219 = vpack.c.b16 %v807, %v803
    %v1220 = vpack.c.b16 %v808, %v804
    %v1221 = vpack.c.b16 %v809, %v805
    %v1222 = vpack.c.b16 %v810, %v806
    %v1223 = vpack.c.b16 %v815, %v811
    %v1224 = vpack.c.b16 %v816, %v812
    %v1225 = vpack.c.b16 %v817, %v813
    %v1226 = vpack.c.b16 %v818, %v814
    %v1227 = vpack.c.b16 %v823, %v819
    %v1228 = vpack.c.b16 %v824, %v820
    %v1229 = vpack.c.b16 %v825, %v821
    %v1230 = vpack.c.b16 %v826, %v822
    %v1231 = vpack.c.b16 %v831, %v827
    %v1232 = vpack.c.b16 %v832, %v828
    %v1233 = vpack.c.b16 %v833, %v829
    %v1234 = vpack.c.b16 %v834, %v830
    %v1235 = vpack.c.b16 %v839, %v835
    %v1236 = vpack.c.b16 %v840, %v836
    %v1237 = vpack.c.b16 %v841, %v837
    %v1238 = vpack.c.b16 %v842, %v838
    %v1239 = vpack.c.b16 %v847, %v843
    %v1240 = vpack.c.b16 %v848, %v844
    %v1241 = vpack.c.b16 %v849, %v845
    %v1242 = vpack.c.b16 %v850, %v846
    %v1243 = vpack.c.b16 %v855, %v851
    %v1244 = vpack.c.b16 %v856, %v852
    %v1245 = vpack.c.b16 %v857, %v853
    %v1246 = vpack.c.b16 %v858, %v854
    %v1247 = vpack.c.b16 %v863, %v859
    %v1248 = vpack.c.b16 %v864, %v860
    %v1249 = vpack.c.b16 %v865, %v861
    %v1250 = vpack.c.b16 %v866, %v862
    %v1251 = vpack.c.b16 %v871, %v867
    %v1252 = vpack.c.b16 %v872, %v868
    %v1253 = vpack.c.b16 %v873, %v869
    %v1254 = vpack.c.b16 %v874, %v870
    %v1255 = vpack.c.b16 %v879, %v875
    %v1256 = vpack.c.b16 %v880, %v876
    %v1257 = vpack.c.b16 %v881, %v877
    %v1258 = vpack.c.b16 %v882, %v878
    %v1259 = vpack.c.b16 %v887, %v883
    %v1260 = vpack.c.b16 %v888, %v884
    %v1261 = vpack.c.b16 %v889, %v885
    %v1262 = vpack.c.b16 %v890, %v886
    %v1263 = vpack.c.b16 %v895, %v891
    %v1264 = vpack.c.b16 %v896, %v892
    %v1265 = vpack.c.b16 %v897, %v893
    %v1266 = vpack.c.b16 %v898, %v894
    %v1267 = vpack.c.b16 %v903, %v899
    %v1268 = vpack.c.b16 %v904, %v900
    %v1269 = vpack.c.b16 %v905, %v901
    %v1270 = vpack.c.b16 %v906, %v902
    %v1271 = vpack.c.b16 %v911, %v907
    %v1272 = vpack.c.b16 %v912, %v908
    %v1273 = vpack.c.b16 %v913, %v909
    %v1274 = vpack.c.b16 %v914, %v910
    %v1275 = vpack.c.b16 %v919, %v915
    %v1276 = vpack.c.b16 %v920, %v916
    %v1277 = vpack.c.b16 %v921, %v917
    %v1278 = vpack.c.b16 %v922, %v918
    %v1279 = vpack.c.b16 %v927, %v923
    %v1280 = vpack.c.b16 %v928, %v924
    %v1281 = vpack.c.b16 %v929, %v925
    %v1282 = vpack.c.b16 %v930, %v926
    %v1283 = vpack.c.b16 %v935, %v931
    %v1284 = vpack.c.b16 %v936, %v932
    %v1285 = vpack.c.b16 %v937, %v933
    %v1286 = vpack.c.b16 %v938, %v934
    %v1287 = vpack.c.b16 %v943, %v939
    %v1288 = vpack.c.b16 %v944, %v940
    %v1289 = vpack.c.b16 %v945, %v941
    %v1290 = vpack.c.b16 %v946, %v942
    %v1291 = vpack.c.b16 %v951, %v947
    %v1292 = vpack.c.b16 %v952, %v948
    %v1293 = vpack.c.b16 %v953, %v949
    %v1294 = vpack.c.b16 %v954, %v950
    %v1295 = vpack.c.b16 %v959, %v955
    %v1296 = vpack.c.b16 %v960, %v956
    %v1297 = vpack.c.b16 %v961, %v957
    %v1298 = vpack.c.b16 %v962, %v958
    %v1299 = vpack.c.b16 %v967, %v963
    %v1300 = vpack.c.b16 %v968, %v964
    %v1301 = vpack.c.b16 %v969, %v965
    %v1302 = vpack.c.b16 %v970, %v966
    %v1303 = vpack.c.b16 %v975, %v971
    %v1304 = vpack.c.b16 %v976, %v972
    %v1305 = vpack.c.b16 %v977, %v973
    %v1306 = vpack.c.b16 %v978, %v974
    %v1307 = vpack.c.b16 %v983, %v979
    %v1308 = vpack.c.b16 %v984, %v980
    %v1309 = vpack.c.b16 %v985, %v981
    %v1310 = vpack.c.b16 %v986, %v982
    %v1311 = vpack.c.b16 %v991, %v987
    %v1312 = vpack.c.b16 %v992, %v988
    %v1313 = vpack.c.b16 %v993, %v989
    %v1314 = vpack.c.b16 %v994, %v990
    %v1315 = vpack.c.b16 %v999, %v995
    %v1316 = vpack.c.b16 %v1000, %v996
    %v1317 = vpack.c.b16 %v1001, %v997
    %v1318 = vpack.c.b16 %v1002, %v998
    %v1319 = vpack.c.b16 %v1007, %v1003
    %v1320 = vpack.c.b16 %v1008, %v1004
    %v1321 = vpack.c.b16 %v1009, %v1005
    %v1322 = vpack.c.b16 %v1010, %v1006
    %v1323 = vpack.c.b16 %v1015, %v1011
    %v1324 = vpack.c.b16 %v1016, %v1012
    %v1325 = vpack.c.b16 %v1017, %v1013
    %v1326 = vpack.c.b16 %v1018, %v1014
    %v1327 = vpack.c.b16 %v1023, %v1019
    %v1328 = vpack.c.b16 %v1024, %v1020
    %v1329 = vpack.c.b16 %v1025, %v1021
    %v1330 = vpack.c.b16 %v1026, %v1022
    %v1331 = vpack.c.b16 %v1031, %v1027
    %v1332 = vpack.c.b16 %v1032, %v1028
    %v1333 = vpack.c.b16 %v1033, %v1029
    %v1334 = vpack.c.b16 %v1034, %v1030
    %v1335 = vpack.c.b16 %v1039, %v1035
    %v1336 = vpack.c.b16 %v1040, %v1036
    %v1337 = vpack.c.b16 %v1041, %v1037
    %v1338 = vpack.c.b16 %v1042, %v1038
    %v1339 = vpack.c.b16 %v1047, %v1043
    %v1340 = vpack.c.b16 %v1048, %v1044
    %v1341 = vpack.c.b16 %v1049, %v1045
    %v1342 = vpack.c.b16 %v1050, %v1046
    %v1343 = vpack.c.b16 %v1055, %v1051
    %v1344 = vpack.c.b16 %v1056, %v1052
    %v1345 = vpack.c.b16 %v1057, %v1053
    %v1346 = vpack.c.b16 %v1058, %v1054
    %v1347 = vpack.c.b16 %v1063, %v1059
    %v1348 = vpack.c.b16 %v1064, %v1060
    %v1349 = vpack.c.b16 %v1065, %v1061
    %v1350 = vpack.c.b16 %v1066, %v1062
    %v1351 = vpack.c.b16 %v1071, %v1067
    %v1352 = vpack.c.b16 %v1072, %v1068
    %v1353 = vpack.c.b16 %v1073, %v1069
    %v1354 = vpack.c.b16 %v1074, %v1070
    %v1355 = vpack.c.b16 %v1079, %v1075
    %v1356 = vpack.c.b16 %v1080, %v1076
    %v1357 = vpack.c.b16 %v1081, %v1077
    %v1358 = vpack.c.b16 %v1082, %v1078
    %v1359 = vpack.c.b16 %v1087, %v1083
    %v1360 = vpack.c.b16 %v1088, %v1084
    %v1361 = vpack.c.b16 %v1089, %v1085
    %v1362 = vpack.c.b16 %v1090, %v1086
    %v1363 = vpack.c.b16 %v1095, %v1091
    %v1364 = vpack.c.b16 %v1096, %v1092
    %v1365 = vpack.c.b16 %v1097, %v1093
    %v1366 = vpack.c.b16 %v1098, %v1094
    %v1367 = vpack.c.b16 %v1103, %v1099
    %v1368 = vpack.c.b16 %v1104, %v1100
    %v1369 = vpack.c.b16 %v1105, %v1101
    %v1370 = vpack.c.b16 %v1106, %v1102
    %v1371 = vpack.c.b16 %v1111, %v1107
    %v1372 = vpack.c.b16 %v1112, %v1108
    %v1373 = vpack.c.b16 %v1113, %v1109
    %v1374 = vpack.c.b16 %v1114, %v1110
    %v1375 = vpack.c.b16 %v1119, %v1115
    %v1376 = vpack.c.b16 %v1120, %v1116
    %v1377 = vpack.c.b16 %v1121, %v1117
    %v1378 = vpack.c.b16 %v1122, %v1118
    %v1379 = vpack.c.b16 %v1127, %v1123
    %v1380 = vpack.c.b16 %v1128, %v1124
    %v1381 = vpack.c.b16 %v1129, %v1125
    %v1382 = vpack.c.b16 %v1130, %v1126
    %v1383 = vpack.c.b16 %v1131, %v1131
    %v1384 = vpack.c.b16 %v1132, %v1132
    %v1385 = vpack.c.b16 %v1133, %v1133
    %v1386 = vpack.c.b16 %v1134, %v1134
    %vm1635 = vcmask 850944
    %v1637 = vsel %vm1635, %v124, 0
    %vm1639 = vcmask 1043456
    %v1641 = vsel %vm1639, %v1383, 0
    %v1644 = vsel %vm1639, %v1384, 0
    %v1647 = vsel %vm1639, %v1385, 0
    %v1650 = vsel %vm1639, %v1386, 0
    %1652 = vmatpush.bf16.msra.mxu0 %v1163
    %1653 = vmatpush.bf16.msra.mxu0 %v1159
    %1654 = vmatpush.bf16.msra.mxu0 %v1155
    %1655 = vmatpush.bf16.msra.mxu0 %v1151
    %1656 = vmatpush.bf16.msra.mxu0 %v1147
    %1657 = vmatpush.bf16.msra.mxu0 %v1143
    %1658 = vmatpush.bf16.msra.mxu0 %v1139
    %1659 = vmatpush.bf16.msra.mxu0 %v1135
    %1660 = vmatmul.bf16.gmra.mxu0 %v117
    %v1661 = vpop.f32.mrf.mxu0
    %v1662 = vadd.f32 %v377, %v1661
    %v1663 = vpop.f32.mrf.mxu0
    %1664 = vdwg.mxu0
    %1665 = vmatpush.bf16.msra.mxu0 %v1195
    %1666 = vmatpush.bf16.msra.mxu0 %v1191
    %1667 = vmatpush.bf16.msra.mxu0 %v1187
    %1668 = vmatpush.bf16.msra.mxu0 %v1183
    %1669 = vmatpush.bf16.msra.mxu0 %v1179
    %1670 = vmatpush.bf16.msra.mxu0 %v1175
    %1671 = vmatpush.bf16.msra.mxu0 %v1171
    %1672 = vmatpush.bf16.msra.mxu0 %v1167
    %1673 = vmatmul.bf16.gmra.mxu0 %v118
    %v1674 = vpop.f32.mrf.mxu0
    %v1675 = vadd.f32 %v1662, %v1674
    %v1676 = vpop.f32.mrf.mxu0
    %1677 = vdwg.mxu0
    %1678 = vmatpush.bf16.msra.mxu0 %v1227
    %1679 = vmatpush.bf16.msra.mxu0 %v1223
    %1680 = vmatpush.bf16.msra.mxu0 %v1219
    %1681 = vmatpush.bf16.msra.mxu0 %v1215
    %1682 = vmatpush.bf16.msra.mxu0 %v1211
    %1683 = vmatpush.bf16.msra.mxu0 %v1207
    %1684 = vmatpush.bf16.msra.mxu0 %v1203
    %1685 = vmatpush.bf16.msra.mxu0 %v1199
    %1686 = vmatmul.bf16.gmra.mxu0 %v119
    %v1687 = vpop.f32.mrf.mxu0
    %v1688 = vadd.f32 %v1675, %v1687
    %v1689 = vpop.f32.mrf.mxu0
    %1690 = vdwg.mxu0
    %1691 = vmatpush.bf16.msra.mxu0 %v1259
    %1692 = vmatpush.bf16.msra.mxu0 %v1255
    %1693 = vmatpush.bf16.msra.mxu0 %v1251
    %1694 = vmatpush.bf16.msra.mxu0 %v1247
    %1695 = vmatpush.bf16.msra.mxu0 %v1243
    %1696 = vmatpush.bf16.msra.mxu0 %v1239
    %1697 = vmatpush.bf16.msra.mxu0 %v1235
    %1698 = vmatpush.bf16.msra.mxu0 %v1231
    %1699 = vmatmul.bf16.gmra.mxu0 %v120
    %v1700 = vpop.f32.mrf.mxu0
    %v1701 = vadd.f32 %v1688, %v1700
    %v1702 = vpop.f32.mrf.mxu0
    %1703 = vdwg.mxu0
    %1704 = vmatpush.bf16.msra.mxu0 %v1291
    %1705 = vmatpush.bf16.msra.mxu0 %v1287
    %1706 = vmatpush.bf16.msra.mxu0 %v1283
    %1707 = vmatpush.bf16.msra.mxu0 %v1279
    %1708 = vmatpush.bf16.msra.mxu0 %v1275
    %1709 = vmatpush.bf16.msra.mxu0 %v1271
    %1710 = vmatpush.bf16.msra.mxu0 %v1267
    %1711 = vmatpush.bf16.msra.mxu0 %v1263
    %1712 = vmatmul.bf16.gmra.mxu0 %v121
    %v1713 = vpop.f32.mrf.mxu0
    %v1714 = vadd.f32 %v1701, %v1713
    %v1715 = vpop.f32.mrf.mxu0
    %1716 = vdwg.mxu0
    %1717 = vmatpush.bf16.msra.mxu0 %v1323
    %1718 = vmatpush.bf16.msra.mxu0 %v1319
    %1719 = vmatpush.bf16.msra.mxu0 %v1315
    %1720 = vmatpush.bf16.msra.mxu0 %v1311
    %1721 = vmatpush.bf16.msra.mxu0 %v1307
    %1722 = vmatpush.bf16.msra.mxu0 %v1303
    %1723 = vmatpush.bf16.msra.mxu0 %v1299
    %1724 = vmatpush.bf16.msra.mxu0 %v1295
    %1725 = vmatmul.bf16.gmra.mxu0 %v122
    %v1726 = vpop.f32.mrf.mxu0
    %v1727 = vadd.f32 %v1714, %v1726
    %v1728 = vpop.f32.mrf.mxu0
    %1729 = vdwg.mxu0
    %1730 = vmatpush.bf16.msra.mxu0 %v1355
    %1731 = vmatpush.bf16.msra.mxu0 %v1351
    %1732 = vmatpush.bf16.msra.mxu0 %v1347
    %1733 = vmatpush.bf16.msra.mxu0 %v1343
    %1734 = vmatpush.bf16.msra.mxu0 %v1339
    %1735 = vmatpush.bf16.msra.mxu0 %v1335
    %1736 = vmatpush.bf16.msra.mxu0 %v1331
    %1737 = vmatpush.bf16.msra.mxu0 %v1327
    %1738 = vmatmul.bf16.gmra.mxu0 %v123
    %v1739 = vpop.f32.mrf.mxu0
    %v1740 = vadd.f32 %v1727, %v1739
    %v1741 = vpop.f32.mrf.mxu0
    %1742 = vdwg.mxu0
    %1743 = vmatpush.bf16.msra.mxu0 0
    %1744 = vmatpush.bf16.msra.mxu0 %v1641
    %1745 = vmatpush.bf16.msra.mxu0 %v1379
    %1746 = vmatpush.bf16.msra.mxu0 %v1375
    %1747 = vmatpush.bf16.msra.mxu0 %v1371
    %1748 = vmatpush.bf16.msra.mxu0 %v1367
    %1749 = vmatpush.bf16.msra.mxu0 %v1363
    %1750 = vmatpush.bf16.msra.mxu0 %v1359
    %1751 = vmatmul.bf16.gmra.mxu0 %v1637
    %v1752 = vpop.f32.mrf.mxu0
    %v1753 = vadd.f32 %v1740, %v1752
    %v1754 = vpop.f32.mrf.mxu0
    %1755 = vdwg.mxu0
    %1756 = vmatpush.bf16.msra.mxu0 %v1164
    %1757 = vmatpush.bf16.msra.mxu0 %v1160
    %1758 = vmatpush.bf16.msra.mxu0 %v1156
    %1759 = vmatpush.bf16.msra.mxu0 %v1152
    %1760 = vmatpush.bf16.msra.mxu0 %v1148
    %1761 = vmatpush.bf16.msra.mxu0 %v1144
    %1762 = vmatpush.bf16.msra.mxu0 %v1140
    %1763 = vmatpush.bf16.msra.mxu0 %v1136
    %1764 = vmatmul.bf16.gmra.mxu0 %v117
    %v1765 = vpop.f32.mrf.mxu0
    %v1766 = vadd.f32 %v378, %v1765
    %v1767 = vpop.f32.mrf.mxu0
    %1768 = vdwg.mxu0
    %1769 = vmatpush.bf16.msra.mxu0 %v1196
    %1770 = vmatpush.bf16.msra.mxu0 %v1192
    %1771 = vmatpush.bf16.msra.mxu0 %v1188
    %1772 = vmatpush.bf16.msra.mxu0 %v1184
    %1773 = vmatpush.bf16.msra.mxu0 %v1180
    %1774 = vmatpush.bf16.msra.mxu0 %v1176
    %1775 = vmatpush.bf16.msra.mxu0 %v1172
    %1776 = vmatpush.bf16.msra.mxu0 %v1168
    %1777 = vmatmul.bf16.gmra.mxu0 %v118
    %v1778 = vpop.f32.mrf.mxu0
    %v1779 = vadd.f32 %v1766, %v1778
    %v1780 = vpop.f32.mrf.mxu0
    %1781 = vdwg.mxu0
    %1782 = vmatpush.bf16.msra.mxu0 %v1228
    %1783 = vmatpush.bf16.msra.mxu0 %v1224
    %1784 = vmatpush.bf16.msra.mxu0 %v1220
    %1785 = vmatpush.bf16.msra.mxu0 %v1216
    %1786 = vmatpush.bf16.msra.mxu0 %v1212
    %1787 = vmatpush.bf16.msra.mxu0 %v1208
    %1788 = vmatpush.bf16.msra.mxu0 %v1204
    %1789 = vmatpush.bf16.msra.mxu0 %v1200
    %1790 = vmatmul.bf16.gmra.mxu0 %v119
    %v1791 = vpop.f32.mrf.mxu0
    %v1792 = vadd.f32 %v1779, %v1791
    %v1793 = vpop.f32.mrf.mxu0
    %1794 = vdwg.mxu0
    %1795 = vmatpush.bf16.msra.mxu0 %v1260
    %1796 = vmatpush.bf16.msra.mxu0 %v1256
    %1797 = vmatpush.bf16.msra.mxu0 %v1252
    %1798 = vmatpush.bf16.msra.mxu0 %v1248
    %1799 = vmatpush.bf16.msra.mxu0 %v1244
    %1800 = vmatpush.bf16.msra.mxu0 %v1240
    %1801 = vmatpush.bf16.msra.mxu0 %v1236
    %1802 = vmatpush.bf16.msra.mxu0 %v1232
    %1803 = vmatmul.bf16.gmra.mxu0 %v120
    %v1804 = vpop.f32.mrf.mxu0
    %v1805 = vadd.f32 %v1792, %v1804
    %v1806 = vpop.f32.mrf.mxu0
    %1807 = vdwg.mxu0
    %1808 = vmatpush.bf16.msra.mxu0 %v1292
    %1809 = vmatpush.bf16.msra.mxu0 %v1288
    %1810 = vmatpush.bf16.msra.mxu0 %v1284
    %1811 = vmatpush.bf16.msra.mxu0 %v1280
    %1812 = vmatpush.bf16.msra.mxu0 %v1276
    %1813 = vmatpush.bf16.msra.mxu0 %v1272
    %1814 = vmatpush.bf16.msra.mxu0 %v1268
    %1815 = vmatpush.bf16.msra.mxu0 %v1264
    %1816 = vmatmul.bf16.gmra.mxu0 %v121
    %v1817 = vpop.f32.mrf.mxu0
    %v1818 = vadd.f32 %v1805, %v1817
    %v1819 = vpop.f32.mrf.mxu0
    %1820 = vdwg.mxu0
    %1821 = vmatpush.bf16.msra.mxu0 %v1324
    %1822 = vmatpush.bf16.msra.mxu0 %v1320
    %1823 = vmatpush.bf16.msra.mxu0 %v1316
    %1824 = vmatpush.bf16.msra.mxu0 %v1312
    %1825 = vmatpush.bf16.msra.mxu0 %v1308
    %1826 = vmatpush.bf16.msra.mxu0 %v1304
    %1827 = vmatpush.bf16.msra.mxu0 %v1300
    %1828 = vmatpush.bf16.msra.mxu0 %v1296
    %1829 = vmatmul.bf16.gmra.mxu0 %v122
    %v1830 = vpop.f32.mrf.mxu0
    %v1831 = vadd.f32 %v1818, %v1830
    %v1832 = vpop.f32.mrf.mxu0
    %1833 = vdwg.mxu0
    %1834 = vmatpush.bf16.msra.mxu0 %v1356
    %1835 = vmatpush.bf16.msra.mxu0 %v1352
    %1836 = vmatpush.bf16.msra.mxu0 %v1348
    %1837 = vmatpush.bf16.msra.mxu0 %v1344
    %1838 = vmatpush.bf16.msra.mxu0 %v1340
    %1839 = vmatpush.bf16.msra.mxu0 %v1336
    %1840 = vmatpush.bf16.msra.mxu0 %v1332
    %1841 = vmatpush.bf16.msra.mxu0 %v1328
    %1842 = vmatmul.bf16.gmra.mxu0 %v123
    %v1843 = vpop.f32.mrf.mxu0
    %v1844 = vadd.f32 %v1831, %v1843
    %v1845 = vpop.f32.mrf.mxu0
    %1846 = vdwg.mxu0
    %1847 = vmatpush.bf16.msra.mxu0 0
    %1848 = vmatpush.bf16.msra.mxu0 %v1644
    %1849 = vmatpush.bf16.msra.mxu0 %v1380
    %1850 = vmatpush.bf16.msra.mxu0 %v1376
    %1851 = vmatpush.bf16.msra.mxu0 %v1372
    %1852 = vmatpush.bf16.msra.mxu0 %v1368
    %1853 = vmatpush.bf16.msra.mxu0 %v1364
    %1854 = vmatpush.bf16.msra.mxu0 %v1360
    %1855 = vmatmul.bf16.gmra.mxu0 %v1637
    %v1856 = vpop.f32.mrf.mxu0
    %v1857 = vadd.f32 %v1844, %v1856
    %v1858 = vpop.f32.mrf.mxu0
    %1859 = vdwg.mxu0
    %1860 = vmatpush.bf16.msra.mxu0 %v1165
    %1861 = vmatpush.bf16.msra.mxu0 %v1161
    %1862 = vmatpush.bf16.msra.mxu0 %v1157
    %1863 = vmatpush.bf16.msra.mxu0 %v1153
    %1864 = vmatpush.bf16.msra.mxu0 %v1149
    %1865 = vmatpush.bf16.msra.mxu0 %v1145
    %1866 = vmatpush.bf16.msra.mxu0 %v1141
    %1867 = vmatpush.bf16.msra.mxu0 %v1137
    %1868 = vmatmul.bf16.gmra.mxu0 %v117
    %v1869 = vpop.f32.mrf.mxu0
    %v1870 = vadd.f32 %v379, %v1869
    %v1871 = vpop.f32.mrf.mxu0
    %1872 = vdwg.mxu0
    %1873 = vmatpush.bf16.msra.mxu0 %v1197
    %1874 = vmatpush.bf16.msra.mxu0 %v1193
    %1875 = vmatpush.bf16.msra.mxu0 %v1189
    %1876 = vmatpush.bf16.msra.mxu0 %v1185
    %1877 = vmatpush.bf16.msra.mxu0 %v1181
    %1878 = vmatpush.bf16.msra.mxu0 %v1177
    %1879 = vmatpush.bf16.msra.mxu0 %v1173
    %1880 = vmatpush.bf16.msra.mxu0 %v1169
    %1881 = vmatmul.bf16.gmra.mxu0 %v118
    %v1882 = vpop.f32.mrf.mxu0
    %v1883 = vadd.f32 %v1870, %v1882
    %v1884 = vpop.f32.mrf.mxu0
    %1885 = vdwg.mxu0
    %1886 = vmatpush.bf16.msra.mxu0 %v1229
    %1887 = vmatpush.bf16.msra.mxu0 %v1225
    %1888 = vmatpush.bf16.msra.mxu0 %v1221
    %1889 = vmatpush.bf16.msra.mxu0 %v1217
    %1890 = vmatpush.bf16.msra.mxu0 %v1213
    %1891 = vmatpush.bf16.msra.mxu0 %v1209
    %1892 = vmatpush.bf16.msra.mxu0 %v1205
    %1893 = vmatpush.bf16.msra.mxu0 %v1201
    %1894 = vmatmul.bf16.gmra.mxu0 %v119
    %v1895 = vpop.f32.mrf.mxu0
    %v1896 = vadd.f32 %v1883, %v1895
    %v1897 = vpop.f32.mrf.mxu0
    %1898 = vdwg.mxu0
    %1899 = vmatpush.bf16.msra.mxu0 %v1261
    %1900 = vmatpush.bf16.msra.mxu0 %v1257
    %1901 = vmatpush.bf16.msra.mxu0 %v1253
    %1902 = vmatpush.bf16.msra.mxu0 %v1249
    %1903 = vmatpush.bf16.msra.mxu0 %v1245
    %1904 = vmatpush.bf16.msra.mxu0 %v1241
    %1905 = vmatpush.bf16.msra.mxu0 %v1237
    %1906 = vmatpush.bf16.msra.mxu0 %v1233
    %1907 = vmatmul.bf16.gmra.mxu0 %v120
    %v1908 = vpop.f32.mrf.mxu0
    %v1909 = vadd.f32 %v1896, %v1908
    %v1910 = vpop.f32.mrf.mxu0
    %1911 = vdwg.mxu0
    %1912 = vmatpush.bf16.msra.mxu0 %v1293
    %1913 = vmatpush.bf16.msra.mxu0 %v1289
    %1914 = vmatpush.bf16.msra.mxu0 %v1285
    %1915 = vmatpush.bf16.msra.mxu0 %v1281
    %1916 = vmatpush.bf16.msra.mxu0 %v1277
    %1917 = vmatpush.bf16.msra.mxu0 %v1273
    %1918 = vmatpush.bf16.msra.mxu0 %v1269
    %1919 = vmatpush.bf16.msra.mxu0 %v1265
    %1920 = vmatmul.bf16.gmra.mxu0 %v121
    %v1921 = vpop.f32.mrf.mxu0
    %v1922 = vadd.f32 %v1909, %v1921
    %v1923 = vpop.f32.mrf.mxu0
    %1924 = vdwg.mxu0
    %1925 = vmatpush.bf16.msra.mxu0 %v1325
    %1926 = vmatpush.bf16.msra.mxu0 %v1321
    %1927 = vmatpush.bf16.msra.mxu0 %v1317
    %1928 = vmatpush.bf16.msra.mxu0 %v1313
    %1929 = vmatpush.bf16.msra.mxu0 %v1309
    %1930 = vmatpush.bf16.msra.mxu0 %v1305
    %1931 = vmatpush.bf16.msra.mxu0 %v1301
    %1932 = vmatpush.bf16.msra.mxu0 %v1297
    %1933 = vmatmul.bf16.gmra.mxu0 %v122
    %v1934 = vpop.f32.mrf.mxu0
    %v1935 = vadd.f32 %v1922, %v1934
    %v1936 = vpop.f32.mrf.mxu0
    %1937 = vdwg.mxu0
    %1938 = vmatpush.bf16.msra.mxu0 %v1357
    %1939 = vmatpush.bf16.msra.mxu0 %v1353
    %1940 = vmatpush.bf16.msra.mxu0 %v1349
    %1941 = vmatpush.bf16.msra.mxu0 %v1345
    %1942 = vmatpush.bf16.msra.mxu0 %v1341
    %1943 = vmatpush.bf16.msra.mxu0 %v1337
    %1944 = vmatpush.bf16.msra.mxu0 %v1333
    %1945 = vmatpush.bf16.msra.mxu0 %v1329
    %1946 = vmatmul.bf16.gmra.mxu0 %v123
    %v1947 = vpop.f32.mrf.mxu0
    %v1948 = vadd.f32 %v1935, %v1947
    %v1949 = vpop.f32.mrf.mxu0
    %1950 = vdwg.mxu0
    %1951 = vmatpush.bf16.msra.mxu0 0
    %1952 = vmatpush.bf16.msra.mxu0 %v1647
    %1953 = vmatpush.bf16.msra.mxu0 %v1381
    %1954 = vmatpush.bf16.msra.mxu0 %v1377
    %1955 = vmatpush.bf16.msra.mxu0 %v1373
    %1956 = vmatpush.bf16.msra.mxu0 %v1369
    %1957 = vmatpush.bf16.msra.mxu0 %v1365
    %1958 = vmatpush.bf16.msra.mxu0 %v1361
    %1959 = vmatmul.bf16.gmra.mxu0 %v1637
    %v1960 = vpop.f32.mrf.mxu0
    %v1961 = vadd.f32 %v1948, %v1960
    %v1962 = vpop.f32.mrf.mxu0
    %1963 = vdwg.mxu0
    %1964 = vmatpush.bf16.msra.mxu0 %v1166
    %1965 = vmatpush.bf16.msra.mxu0 %v1162
    %1966 = vmatpush.bf16.msra.mxu0 %v1158
    %1967 = vmatpush.bf16.msra.mxu0 %v1154
    %1968 = vmatpush.bf16.msra.mxu0 %v1150
    %1969 = vmatpush.bf16.msra.mxu0 %v1146
    %1970 = vmatpush.bf16.msra.mxu0 %v1142
    %1971 = vmatpush.bf16.msra.mxu0 %v1138
    %1972 = vmatmul.bf16.gmra.mxu0 %v117
    %v1973 = vpop.f32.mrf.mxu0
    %v1974 = vadd.f32 %v380, %v1973
    %v1975 = vpop.f32.mrf.mxu0
    %1976 = vdwg.mxu0
    %1977 = vmatpush.bf16.msra.mxu0 %v1198
    %1978 = vmatpush.bf16.msra.mxu0 %v1194
    %1979 = vmatpush.bf16.msra.mxu0 %v1190
    %1980 = vmatpush.bf16.msra.mxu0 %v1186
    %1981 = vmatpush.bf16.msra.mxu0 %v1182
    %1982 = vmatpush.bf16.msra.mxu0 %v1178
    %1983 = vmatpush.bf16.msra.mxu0 %v1174
    %1984 = vmatpush.bf16.msra.mxu0 %v1170
    %1985 = vmatmul.bf16.gmra.mxu0 %v118
    %v1986 = vpop.f32.mrf.mxu0
    %v1987 = vadd.f32 %v1974, %v1986
    %v1988 = vpop.f32.mrf.mxu0
    %1989 = vdwg.mxu0
    %1990 = vmatpush.bf16.msra.mxu0 %v1230
    %1991 = vmatpush.bf16.msra.mxu0 %v1226
    %1992 = vmatpush.bf16.msra.mxu0 %v1222
    %1993 = vmatpush.bf16.msra.mxu0 %v1218
    %1994 = vmatpush.bf16.msra.mxu0 %v1214
    %1995 = vmatpush.bf16.msra.mxu0 %v1210
    %1996 = vmatpush.bf16.msra.mxu0 %v1206
    %1997 = vmatpush.bf16.msra.mxu0 %v1202
    %1998 = vmatmul.bf16.gmra.mxu0 %v119
    %v1999 = vpop.f32.mrf.mxu0
    %v2000 = vadd.f32 %v1987, %v1999
    %v2001 = vpop.f32.mrf.mxu0
    %2002 = vdwg.mxu0
    %2003 = vmatpush.bf16.msra.mxu0 %v1262
    %2004 = vmatpush.bf16.msra.mxu0 %v1258
    %2005 = vmatpush.bf16.msra.mxu0 %v1254
    %2006 = vmatpush.bf16.msra.mxu0 %v1250
    %2007 = vmatpush.bf16.msra.mxu0 %v1246
    %2008 = vmatpush.bf16.msra.mxu0 %v1242
    %2009 = vmatpush.bf16.msra.mxu0 %v1238
    %2010 = vmatpush.bf16.msra.mxu0 %v1234
    %2011 = vmatmul.bf16.gmra.mxu0 %v120
    %v2012 = vpop.f32.mrf.mxu0
    %v2013 = vadd.f32 %v2000, %v2012
    %v2014 = vpop.f32.mrf.mxu0
    %2015 = vdwg.mxu0
    %2016 = vmatpush.bf16.msra.mxu0 %v1294
    %2017 = vmatpush.bf16.msra.mxu0 %v1290
    %2018 = vmatpush.bf16.msra.mxu0 %v1286
    %2019 = vmatpush.bf16.msra.mxu0 %v1282
    %2020 = vmatpush.bf16.msra.mxu0 %v1278
    %2021 = vmatpush.bf16.msra.mxu0 %v1274
    %2022 = vmatpush.bf16.msra.mxu0 %v1270
    %2023 = vmatpush.bf16.msra.mxu0 %v1266
    %2024 = vmatmul.bf16.gmra.mxu0 %v121
    %v2025 = vpop.f32.mrf.mxu0
    %v2026 = vadd.f32 %v2013, %v2025
    %v2027 = vpop.f32.mrf.mxu0
    %2028 = vdwg.mxu0
    %2029 = vmatpush.bf16.msra.mxu0 %v1326
    %2030 = vmatpush.bf16.msra.mxu0 %v1322
    %2031 = vmatpush.bf16.msra.mxu0 %v1318
    %2032 = vmatpush.bf16.msra.mxu0 %v1314
    %2033 = vmatpush.bf16.msra.mxu0 %v1310
    %2034 = vmatpush.bf16.msra.mxu0 %v1306
    %2035 = vmatpush.bf16.msra.mxu0 %v1302
    %2036 = vmatpush.bf16.msra.mxu0 %v1298
    %2037 = vmatmul.bf16.gmra.mxu0 %v122
    %v2038 = vpop.f32.mrf.mxu0
    %v2039 = vadd.f32 %v2026, %v2038
    %v2040 = vpop.f32.mrf.mxu0
    %2041 = vdwg.mxu0
    %2042 = vmatpush.bf16.msra.mxu0 %v1358
    %2043 = vmatpush.bf16.msra.mxu0 %v1354
    %2044 = vmatpush.bf16.msra.mxu0 %v1350
    %2045 = vmatpush.bf16.msra.mxu0 %v1346
    %2046 = vmatpush.bf16.msra.mxu0 %v1342
    %2047 = vmatpush.bf16.msra.mxu0 %v1338
    %2048 = vmatpush.bf16.msra.mxu0 %v1334
    %2049 = vmatpush.bf16.msra.mxu0 %v1330
    %2050 = vmatmul.bf16.gmra.mxu0 %v123
    %v2051 = vpop.f32.mrf.mxu0
    %v2052 = vadd.f32 %v2039, %v2051
    %v2053 = vpop.f32.mrf.mxu0
    %2054 = vdwg.mxu0
    %2055 = vmatpush.bf16.msra.mxu0 0
    %2056 = vmatpush.bf16.msra.mxu0 %v1650
    %2057 = vmatpush.bf16.msra.mxu0 %v1382
    %2058 = vmatpush.bf16.msra.mxu0 %v1378
    %2059 = vmatpush.bf16.msra.mxu0 %v1374
    %2060 = vmatpush.bf16.msra.mxu0 %v1370
    %2061 = vmatpush.bf16.msra.mxu0 %v1366
    %2062 = vmatpush.bf16.msra.mxu0 %v1362
    %2063 = vmatmul.bf16.gmra.mxu0 %v1637
    %v2064 = vpop.f32.mrf.mxu0
    %v2065 = vadd.f32 %v2052, %v2064
    %v2066 = vpop.f32.mrf.mxu0
    %2067 = vdwg.mxu0
    %v2068 = vmax.f32 %v1753, 0.0
    %v2069 = vmax.f32 %v1857, 0.0
    %v2070 = vmax.f32 %v1961, 0.0
    %v2071 = vmax.f32 %v2065, 0.0
    %v2072 = vpack.c.bf16 %v2068, %v2068
    %v2073 = vpack.c.bf16 %v2069, %v2069
    %v2074 = vpack.c.bf16 %v2070, %v2070
    %v2075 = vpack.c.bf16 %v2071, %v2071
    %v2076 = vld [vmem:[#allocation8] sm:$0xff]
    %v2077 = vld [vmem:[#allocation8 + $0x8] sm:$0xff]
    %v2078 = vld [vmem:[#allocation8 + $0x10] sm:$0xff]
    %v2079 = vld [vmem:[#allocation8 + $0x18] sm:$0xff]
    %v2080 = vld [vmem:[#allocation8 + $0x20] sm:$0xff]
    %v2081 = vld [vmem:[#allocation8 + $0x28] sm:$0xff]
    %v2082 = vld [vmem:[#allocation8 + $0x30] sm:$0xff]
    %v2083 = vld [vmem:[#allocation8 + $0x38] sm:$0xff]
    %v2084 = vld [vmem:[#allocation8 + $0x40] sm:$0xff]
    %v2085 = vld [vmem:[#allocation8 + $0x48] sm:$0xff]
    %v2086 = vld [vmem:[#allocation8 + $0x50] sm:$0xff]
    %v2087 = vld [vmem:[#allocation8 + $0x58] sm:$0xff]
    %v2088 = vld [vmem:[#allocation8 + $0x60] sm:$0xff]
    %v2089 = vld [vmem:[#allocation8 + $0x68] sm:$0xff]
    %v2090 = vld [vmem:[#allocation8 + $0x70] sm:$0xff]
    %v2091 = vld [vmem:[#allocation8 + $0x78] sm:$0xff]
    %v2092 = vld [vmem:[#allocation8 + $0x80] sm:$0xff]
    %v2093 = vld [vmem:[#allocation8 + $0x88] sm:$0xff]
    %v2094 = vld [vmem:[#allocation8 + $0x90] sm:$0xff]
    %v2095 = vld [vmem:[#allocation8 + $0x98] sm:$0xff]
    %v2096 = vld [vmem:[#allocation8 + $0xa0] sm:$0xff]
    %v2097 = vld [vmem:[#allocation8 + $0xa8] sm:$0xff]
    %v2098 = vld [vmem:[#allocation8 + $0xb0] sm:$0xff]
    %v2099 = vld [vmem:[#allocation8 + $0xb8] sm:$0xff]
    %v2100 = vld [vmem:[#allocation8 + $0xc0] sm:$0xff]
    %v2101 = vld [vmem:[#allocation8 + $0xc8] sm:$0xff]
    %v2102 = vld [vmem:[#allocation8 + $0xd0] sm:$0xff]
    %v2103 = vld [vmem:[#allocation8 + $0xd8] sm:$0xff]
    %v2104 = vld [vmem:[#allocation8 + $0xe0] sm:$0xff]
    %v2105 = vld [vmem:[#allocation8 + $0xe8] sm:$0xff]
    %v2106 = vld [vmem:[#allocation8 + $0xf0] sm:$0xff]
    %v2107 = vld [vmem:[#allocation8 + $0xf8] sm:$0xff]
    %v2108 = vld [vmem:[#allocation8 + $0x100] sm:$0xff]
    %v2109 = vld [vmem:[#allocation8 + $0x108] sm:$0xff]
    %v2110 = vld [vmem:[#allocation8 + $0x110] sm:$0xff]
    %v2111 = vld [vmem:[#allocation8 + $0x118] sm:$0xff]
    %v2112 = vld [vmem:[#allocation8 + $0x120] sm:$0xff]
    %v2113 = vld [vmem:[#allocation8 + $0x128] sm:$0xff]
    %v2114 = vld [vmem:[#allocation8 + $0x130] sm:$0xff]
    %v2115 = vld [vmem:[#allocation8 + $0x138] sm:$0xff]
    %v2116 = vld [vmem:[#allocation8 + $0x140] sm:$0xff]
    %v2117 = vld [vmem:[#allocation8 + $0x148] sm:$0xff]
    %v2118 = vld [vmem:[#allocation8 + $0x150] sm:$0xff]
    %v2119 = vld [vmem:[#allocation8 + $0x158] sm:$0xff]
    %v2120 = vld [vmem:[#allocation8 + $0x160] sm:$0xff]
    %v2121 = vld [vmem:[#allocation8 + $0x168] sm:$0xff]
    %v2122 = vld [vmem:[#allocation8 + $0x170] sm:$0xff]
    %v2123 = vld [vmem:[#allocation8 + $0x178] sm:$0xff]
    %v2124 = vld [vmem:[#allocation8 + $0x180] sm:$0xff]
    %v2125 = vld [vmem:[#allocation8 + $0x188] sm:$0xff]
    %v2126 = vld [vmem:[#allocation8 + $0x190] sm:$0xff]
    %v2127 = vld [vmem:[#allocation8 + $0x198] sm:$0xff]
    %v2128 = vld [vmem:[#allocation8 + $0x1a0] sm:$0xff]
    %v2129 = vld [vmem:[#allocation8 + $0x1a8] sm:$0xff]
    %v2130 = vld [vmem:[#allocation8 + $0x1b0] sm:$0xff]
    %v2131 = vld [vmem:[#allocation8 + $0x1b8] sm:$0xff]
    %v2132 = vld [vmem:[#allocation8 + $0x1c0] sm:$0xff]
    %v2133 = vld [vmem:[#allocation8 + $0x1c8] sm:$0xff]
    %v2134 = vld [vmem:[#allocation8 + $0x1d0] sm:$0xff]
    %v2135 = vld [vmem:[#allocation8 + $0x1d8] sm:$0xff]
    %v2136 = vld [vmem:[#allocation8 + $0x1e0] sm:$0xff]
    %v2137 = vld [vmem:[#allocation8 + $0x1e8] sm:$0xff]
    %v2138 = vld [vmem:[#allocation8 + $0x1f0] sm:$0xff]
    %v2139 = vld [vmem:[#allocation8 + $0x1f8] sm:$0xff]
    %v2140 = vld [vmem:[%s4] sm:$0x3]
    %v2142 = vperm.slane %v2140, 0
    %v2143 = vperm.slane %v2140, 1
    %v2210 = vunpack.c.l.b16 %v2076
    %v2211 = vunpack.c.h.b16 %v2076
    %v2212 = vunpack.c.l.b16 %v2077
    %v2213 = vunpack.c.h.b16 %v2077
    %v2214 = vunpack.c.l.b16 %v2078
    %v2215 = vunpack.c.h.b16 %v2078
    %v2216 = vunpack.c.l.b16 %v2079
    %v2217 = vunpack.c.h.b16 %v2079
    %v2218 = vunpack.c.l.b16 %v2080
    %v2219 = vunpack.c.h.b16 %v2080
    %v2220 = vunpack.c.l.b16 %v2081
    %v2221 = vunpack.c.h.b16 %v2081
    %v2222 = vunpack.c.l.b16 %v2082
    %v2223 = vunpack.c.h.b16 %v2082
    %v2224 = vunpack.c.l.b16 %v2083
    %v2225 = vunpack.c.h.b16 %v2083
    %v2226 = vunpack.c.l.b16 %v2084
    %v2227 = vunpack.c.h.b16 %v2084
    %v2228 = vunpack.c.l.b16 %v2085
    %v2229 = vunpack.c.h.b16 %v2085
    %v2230 = vunpack.c.l.b16 %v2086
    %v2231 = vunpack.c.h.b16 %v2086
    %v2232 = vunpack.c.l.b16 %v2087
    %v2233 = vunpack.c.h.b16 %v2087
    %v2234 = vunpack.c.l.b16 %v2088
    %v2235 = vunpack.c.h.b16 %v2088
    %v2236 = vunpack.c.l.b16 %v2089
    %v2237 = vunpack.c.h.b16 %v2089
    %v2238 = vunpack.c.l.b16 %v2090
    %v2239 = vunpack.c.h.b16 %v2090
    %v2240 = vunpack.c.l.b16 %v2091
    %v2241 = vunpack.c.h.b16 %v2091
    %v2242 = vunpack.c.l.b16 %v2092
    %v2243 = vunpack.c.h.b16 %v2092
    %v2244 = vunpack.c.l.b16 %v2093
    %v2245 = vunpack.c.h.b16 %v2093
    %v2246 = vunpack.c.l.b16 %v2094
    %v2247 = vunpack.c.h.b16 %v2094
    %v2248 = vunpack.c.l.b16 %v2095
    %v2249 = vunpack.c.h.b16 %v2095
    %v2250 = vunpack.c.l.b16 %v2096
    %v2251 = vunpack.c.h.b16 %v2096
    %v2252 = vunpack.c.l.b16 %v2097
    %v2253 = vunpack.c.h.b16 %v2097
    %v2254 = vunpack.c.l.b16 %v2098
    %v2255 = vunpack.c.h.b16 %v2098
    %v2256 = vunpack.c.l.b16 %v2099
    %v2257 = vunpack.c.h.b16 %v2099
    %v2258 = vunpack.c.l.b16 %v2100
    %v2259 = vunpack.c.h.b16 %v2100
    %v2260 = vunpack.c.l.b16 %v2101
    %v2261 = vunpack.c.h.b16 %v2101
    %v2262 = vunpack.c.l.b16 %v2102
    %v2263 = vunpack.c.h.b16 %v2102
    %v2264 = vunpack.c.l.b16 %v2103
    %v2265 = vunpack.c.h.b16 %v2103
    %v2266 = vunpack.c.l.b16 %v2104
    %v2267 = vunpack.c.h.b16 %v2104
    %v2268 = vunpack.c.l.b16 %v2105
    %v2269 = vunpack.c.h.b16 %v2105
    %v2270 = vunpack.c.l.b16 %v2106
    %v2271 = vunpack.c.h.b16 %v2106
    %v2272 = vunpack.c.l.b16 %v2107
    %v2273 = vunpack.c.h.b16 %v2107
    %v2274 = vunpack.c.l.b16 %v2108
    %v2275 = vunpack.c.h.b16 %v2108
    %v2276 = vunpack.c.l.b16 %v2109
    %v2277 = vunpack.c.h.b16 %v2109
    %v2278 = vunpack.c.l.b16 %v2110
    %v2279 = vunpack.c.h.b16 %v2110
    %v2280 = vunpack.c.l.b16 %v2111
    %v2281 = vunpack.c.h.b16 %v2111
    %v2282 = vunpack.c.l.b16 %v2112
    %v2283 = vunpack.c.h.b16 %v2112
    %v2284 = vunpack.c.l.b16 %v2113
    %v2285 = vunpack.c.h.b16 %v2113
    %v2286 = vunpack.c.l.b16 %v2114
    %v2287 = vunpack.c.h.b16 %v2114
    %v2288 = vunpack.c.l.b16 %v2115
    %v2289 = vunpack.c.h.b16 %v2115
    %v2290 = vunpack.c.l.b16 %v2116
    %v2291 = vunpack.c.h.b16 %v2116
    %v2292 = vunpack.c.l.b16 %v2117
    %v2293 = vunpack.c.h.b16 %v2117
    %v2294 = vunpack.c.l.b16 %v2118
    %v2295 = vunpack.c.h.b16 %v2118
    %v2296 = vunpack.c.l.b16 %v2119
    %v2297 = vunpack.c.h.b16 %v2119
    %v2298 = vunpack.c.l.b16 %v2120
    %v2299 = vunpack.c.h.b16 %v2120
    %v2300 = vunpack.c.l.b16 %v2121
    %v2301 = vunpack.c.h.b16 %v2121
    %v2302 = vunpack.c.l.b16 %v2122
    %v2303 = vunpack.c.h.b16 %v2122
    %v2304 = vunpack.c.l.b16 %v2123
    %v2305 = vunpack.c.h.b16 %v2123
    %v2306 = vunpack.c.l.b16 %v2124
    %v2307 = vunpack.c.h.b16 %v2124
    %v2308 = vunpack.c.l.b16 %v2125
    %v2309 = vunpack.c.h.b16 %v2125
    %v2310 = vunpack.c.l.b16 %v2126
    %v2311 = vunpack.c.h.b16 %v2126
    %v2312 = vunpack.c.l.b16 %v2127
    %v2313 = vunpack.c.h.b16 %v2127
    %v2314 = vunpack.c.l.b16 %v2128
    %v2315 = vunpack.c.h.b16 %v2128
    %v2316 = vunpack.c.l.b16 %v2129
    %v2317 = vunpack.c.h.b16 %v2129
    %v2318 = vunpack.c.l.b16 %v2130
    %v2319 = vunpack.c.h.b16 %v2130
    %v2320 = vunpack.c.l.b16 %v2131
    %v2321 = vunpack.c.h.b16 %v2131
    %v2322 = vunpack.c.l.b16 %v2132
    %v2323 = vunpack.c.h.b16 %v2132
    %v2324 = vunpack.c.l.b16 %v2133
    %v2325 = vunpack.c.h.b16 %v2133
    %v2326 = vunpack.c.l.b16 %v2134
    %v2327 = vunpack.c.h.b16 %v2134
    %v2328 = vunpack.c.l.b16 %v2135
    %v2329 = vunpack.c.h.b16 %v2135
    %v2330 = vunpack.c.l.b16 %v2136
    %v2331 = vunpack.c.h.b16 %v2136
    %v2332 = vunpack.c.l.b16 %v2137
    %v2333 = vunpack.c.h.b16 %v2137
    %v2334 = vunpack.c.l.b16 %v2138
    %v2335 = vunpack.c.h.b16 %v2138
    %v2336 = vunpack.c.l.b16 %v2139
    %v2337 = vunpack.c.h.b16 %v2139
    %v2338 = vpack.c.b16 %v2212, %v2210
    %v2339 = vpack.c.b16 %v2213, %v2211
    %v2340 = vpack.c.b16 %v2216, %v2214
    %v2341 = vpack.c.b16 %v2217, %v2215
    %v2342 = vpack.c.b16 %v2220, %v2218
    %v2343 = vpack.c.b16 %v2221, %v2219
    %v2344 = vpack.c.b16 %v2224, %v2222
    %v2345 = vpack.c.b16 %v2225, %v2223
    %v2346 = vpack.c.b16 %v2228, %v2226
    %v2347 = vpack.c.b16 %v2229, %v2227
    %v2348 = vpack.c.b16 %v2232, %v2230
    %v2349 = vpack.c.b16 %v2233, %v2231
    %v2350 = vpack.c.b16 %v2236, %v2234
    %v2351 = vpack.c.b16 %v2237, %v2235
    %v2352 = vpack.c.b16 %v2240, %v2238
    %v2353 = vpack.c.b16 %v2241, %v2239
    %v2354 = vpack.c.b16 %v2244, %v2242
    %v2355 = vpack.c.b16 %v2245, %v2243
    %v2356 = vpack.c.b16 %v2248, %v2246
    %v2357 = vpack.c.b16 %v2249, %v2247
    %v2358 = vpack.c.b16 %v2252, %v2250
    %v2359 = vpack.c.b16 %v2253, %v2251
    %v2360 = vpack.c.b16 %v2256, %v2254
    %v2361 = vpack.c.b16 %v2257, %v2255
    %v2362 = vpack.c.b16 %v2260, %v2258
    %v2363 = vpack.c.b16 %v2261, %v2259
    %v2364 = vpack.c.b16 %v2264, %v2262
    %v2365 = vpack.c.b16 %v2265, %v2263
    %v2366 = vpack.c.b16 %v2268, %v2266
    %v2367 = vpack.c.b16 %v2269, %v2267
    %v2368 = vpack.c.b16 %v2272, %v2270
    %v2369 = vpack.c.b16 %v2273, %v2271
    %v2370 = vpack.c.b16 %v2276, %v2274
    %v2371 = vpack.c.b16 %v2277, %v2275
    %v2372 = vpack.c.b16 %v2280, %v2278
    %v2373 = vpack.c.b16 %v2281, %v2279
    %v2374 = vpack.c.b16 %v2284, %v2282
    %v2375 = vpack.c.b16 %v2285, %v2283
    %v2376 = vpack.c.b16 %v2288, %v2286
    %v2377 = vpack.c.b16 %v2289, %v2287
    %v2378 = vpack.c.b16 %v2292, %v2290
    %v2379 = vpack.c.b16 %v2293, %v2291
    %v2380 = vpack.c.b16 %v2296, %v2294
    %v2381 = vpack.c.b16 %v2297, %v2295
    %v2382 = vpack.c.b16 %v2300, %v2298
    %v2383 = vpack.c.b16 %v2301, %v2299
    %v2384 = vpack.c.b16 %v2304, %v2302
    %v2385 = vpack.c.b16 %v2305, %v2303
    %v2386 = vpack.c.b16 %v2308, %v2306
    %v2387 = vpack.c.b16 %v2309, %v2307
    %v2388 = vpack.c.b16 %v2312, %v2310
    %v2389 = vpack.c.b16 %v2313, %v2311
    %v2390 = vpack.c.b16 %v2316, %v2314
    %v2391 = vpack.c.b16 %v2317, %v2315
    %v2392 = vpack.c.b16 %v2320, %v2318
    %v2393 = vpack.c.b16 %v2321, %v2319
    %v2394 = vpack.c.b16 %v2324, %v2322
    %v2395 = vpack.c.b16 %v2325, %v2323
    %v2396 = vpack.c.b16 %v2328, %v2326
    %v2397 = vpack.c.b16 %v2329, %v2327
    %v2398 = vpack.c.b16 %v2332, %v2330
    %v2399 = vpack.c.b16 %v2333, %v2331
    %v2400 = vpack.c.b16 %v2336, %v2334
    %v2401 = vpack.c.b16 %v2337, %v2335
    %2466 = vmatpush.bf16.msra.mxu0 %v2352
    %2467 = vmatpush.bf16.msra.mxu0 %v2350
    %2468 = vmatpush.bf16.msra.mxu0 %v2348
    %2469 = vmatpush.bf16.msra.mxu0 %v2346
    %2470 = vmatpush.bf16.msra.mxu0 %v2344
    %2471 = vmatpush.bf16.msra.mxu0 %v2342
    %2472 = vmatpush.bf16.msra.mxu0 %v2340
    %2473 = vmatpush.bf16.msra.mxu0 %v2338
    %2474 = vmatmul.bf16.gmra.mxu0 %v2072
    %v2475 = vpop.f32.mrf.mxu0
    %v2476 = vadd.f32 %v2142, %v2475
    %v2477 = vpop.f32.mrf.mxu0
    %2478 = vdwg.mxu0
    %2479 = vmatpush.bf16.msra.mxu0 %v2368
    %2480 = vmatpush.bf16.msra.mxu0 %v2366
    %2481 = vmatpush.bf16.msra.mxu0 %v2364
    %2482 = vmatpush.bf16.msra.mxu0 %v2362
    %2483 = vmatpush.bf16.msra.mxu0 %v2360
    %2484 = vmatpush.bf16.msra.mxu0 %v2358
    %2485 = vmatpush.bf16.msra.mxu0 %v2356
    %2486 = vmatpush.bf16.msra.mxu0 %v2354
    %2487 = vmatmul.bf16.gmra.mxu0 %v2073
    %v2488 = vpop.f32.mrf.mxu0
    %v2489 = vadd.f32 %v2476, %v2488
    %v2490 = vpop.f32.mrf.mxu0
    %2491 = vdwg.mxu0
    %2492 = vmatpush.bf16.msra.mxu0 %v2384
    %2493 = vmatpush.bf16.msra.mxu0 %v2382
    %2494 = vmatpush.bf16.msra.mxu0 %v2380
    %2495 = vmatpush.bf16.msra.mxu0 %v2378
    %2496 = vmatpush.bf16.msra.mxu0 %v2376
    %2497 = vmatpush.bf16.msra.mxu0 %v2374
    %2498 = vmatpush.bf16.msra.mxu0 %v2372
    %2499 = vmatpush.bf16.msra.mxu0 %v2370
    %2500 = vmatmul.bf16.gmra.mxu0 %v2074
    %v2501 = vpop.f32.mrf.mxu0
    %v2502 = vadd.f32 %v2489, %v2501
    %v2503 = vpop.f32.mrf.mxu0
    %2504 = vdwg.mxu0
    %2505 = vmatpush.bf16.msra.mxu0 %v2400
    %2506 = vmatpush.bf16.msra.mxu0 %v2398
    %2507 = vmatpush.bf16.msra.mxu0 %v2396
    %2508 = vmatpush.bf16.msra.mxu0 %v2394
    %2509 = vmatpush.bf16.msra.mxu0 %v2392
    %2510 = vmatpush.bf16.msra.mxu0 %v2390
    %2511 = vmatpush.bf16.msra.mxu0 %v2388
    %2512 = vmatpush.bf16.msra.mxu0 %v2386
    %2513 = vmatmul.bf16.gmra.mxu0 %v2075
    %v2514 = vpop.f32.mrf.mxu0
    %v2515 = vadd.f32 %v2502, %v2514
    %v2516 = vpop.f32.mrf.mxu0
    %2517 = vdwg.mxu0
    %2518 = vmatpush.bf16.msra.mxu0 %v2353
    %2519 = vmatpush.bf16.msra.mxu0 %v2351
    %2520 = vmatpush.bf16.msra.mxu0 %v2349
    %2521 = vmatpush.bf16.msra.mxu0 %v2347
    %2522 = vmatpush.bf16.msra.mxu0 %v2345
    %2523 = vmatpush.bf16.msra.mxu0 %v2343
    %2524 = vmatpush.bf16.msra.mxu0 %v2341
    %2525 = vmatpush.bf16.msra.mxu0 %v2339
    %2526 = vmatmul.bf16.gmra.mxu0 %v2072
    %v2527 = vpop.f32.mrf.mxu0
    %v2528 = vadd.f32 %v2143, %v2527
    %v2529 = vpop.f32.mrf.mxu0
    %2530 = vdwg.mxu0
    %2531 = vmatpush.bf16.msra.mxu0 %v2369
    %2532 = vmatpush.bf16.msra.mxu0 %v2367
    %2533 = vmatpush.bf16.msra.mxu0 %v2365
    %2534 = vmatpush.bf16.msra.mxu0 %v2363
    %2535 = vmatpush.bf16.msra.mxu0 %v2361
    %2536 = vmatpush.bf16.msra.mxu0 %v2359
    %2537 = vmatpush.bf16.msra.mxu0 %v2357
    %2538 = vmatpush.bf16.msra.mxu0 %v2355
    %2539 = vmatmul.bf16.gmra.mxu0 %v2073
    %v2540 = vpop.f32.mrf.mxu0
    %v2541 = vadd.f32 %v2528, %v2540
    %v2542 = vpop.f32.mrf.mxu0
    %2543 = vdwg.mxu0
    %2544 = vmatpush.bf16.msra.mxu0 %v2385
    %2545 = vmatpush.bf16.msra.mxu0 %v2383
    %2546 = vmatpush.bf16.msra.mxu0 %v2381
    %2547 = vmatpush.bf16.msra.mxu0 %v2379
    %2548 = vmatpush.bf16.msra.mxu0 %v2377
    %2549 = vmatpush.bf16.msra.mxu0 %v2375
    %2550 = vmatpush.bf16.msra.mxu0 %v2373
    %2551 = vmatpush.bf16.msra.mxu0 %v2371
    %2552 = vmatmul.bf16.gmra.mxu0 %v2074
    %v2553 = vpop.f32.mrf.mxu0
    %v2554 = vadd.f32 %v2541, %v2553
    %v2555 = vpop.f32.mrf.mxu0
    %2556 = vdwg.mxu0
    %2557 = vmatpush.bf16.msra.mxu0 %v2401
    %2558 = vmatpush.bf16.msra.mxu0 %v2399
    %2559 = vmatpush.bf16.msra.mxu0 %v2397
    %2560 = vmatpush.bf16.msra.mxu0 %v2395
    %2561 = vmatpush.bf16.msra.mxu0 %v2393
    %2562 = vmatpush.bf16.msra.mxu0 %v2391
    %2563 = vmatpush.bf16.msra.mxu0 %v2389
    %2564 = vmatpush.bf16.msra.mxu0 %v2387
    %2565 = vmatmul.bf16.gmra.mxu0 %v2075
    %v2566 = vpop.f32.mrf.mxu0
    %v2567 = vadd.f32 %v2554, %v2566
    %v2568 = vpop.f32.mrf.mxu0
    %2569 = vdwg.mxu0
    %v2570 = vmax.f32 %v2515, 0.0
    %v2571 = vmax.f32 %v2567, 0.0
    %v2572 = vpack.c.bf16 %v2570, %v2570
    %v2573 = vpack.c.bf16 %v2571, %v2571
    %v2574 = vld [vmem:[#allocation10] sm:$0xf]
    %v2575 = vld [vmem:[#allocation10 + $0x4] sm:$0xf]
    %v2576 = vld [vmem:[#allocation10 + $0x8] sm:$0xf]
    %v2577 = vld [vmem:[#allocation10 + $0xc] sm:$0xf]
    %v2578 = vld [vmem:[#allocation10 + $0x10] sm:$0xf]
    %v2579 = vld [vmem:[#allocation10 + $0x14] sm:$0xf]
    %v2580 = vld [vmem:[#allocation10 + $0x18] sm:$0xf]
    %v2581 = vld [vmem:[#allocation10 + $0x1c] sm:$0xf]
    %v2582 = vld [vmem:[#allocation10 + $0x20] sm:$0xf]
    %v2583 = vld [vmem:[#allocation10 + $0x24] sm:$0xf]
    %v2584 = vld [vmem:[#allocation10 + $0x28] sm:$0xf]
    %v2585 = vld [vmem:[#allocation10 + $0x2c] sm:$0xf]
    %v2586 = vld [vmem:[#allocation10 + $0x30] sm:$0xf]
    %v2587 = vld [vmem:[#allocation10 + $0x34] sm:$0xf]
    %v2588 = vld [vmem:[#allocation10 + $0x38] sm:$0xf]
    %v2589 = vld [vmem:[#allocation10 + $0x3c] sm:$0xf]
    %v2590 = vld [vmem:[#allocation10 + $0x40] sm:$0xf]
    %v2591 = vld [vmem:[#allocation10 + $0x44] sm:$0xf]
    %v2592 = vld [vmem:[#allocation10 + $0x48] sm:$0xf]
    %v2593 = vld [vmem:[#allocation10 + $0x4c] sm:$0xf]
    %v2594 = vld [vmem:[#allocation10 + $0x50] sm:$0xf]
    %v2595 = vld [vmem:[#allocation10 + $0x54] sm:$0xf]
    %v2596 = vld [vmem:[#allocation10 + $0x58] sm:$0xf]
    %v2597 = vld [vmem:[#allocation10 + $0x5c] sm:$0xf]
    %v2598 = vld [vmem:[#allocation10 + $0x60] sm:$0xf]
    %v2599 = vld [vmem:[#allocation10 + $0x64] sm:$0xf]
    %v2600 = vld [vmem:[#allocation10 + $0x68] sm:$0xf]
    %v2601 = vld [vmem:[#allocation10 + $0x6c] sm:$0xf]
    %v2602 = vld [vmem:[#allocation10 + $0x70] sm:$0xf]
    %v2603 = vld [vmem:[#allocation10 + $0x74] sm:$0xf]
    %v2604 = vld [vmem:[#allocation10 + $0x78] sm:$0xf]
    %v2605 = vld [vmem:[#allocation10 + $0x7c] sm:$0xf]
    %v2606 = vld [vmem:[%s6] sm:$0x1]
    %v2608 = vperm.slane %v2606, 0
    %v2642 = vunpack.c.l.b16 %v2574
    %v2643 = vunpack.c.l.b16 %v2575
    %v2644 = vunpack.c.l.b16 %v2576
    %v2645 = vunpack.c.l.b16 %v2577
    %v2646 = vunpack.c.l.b16 %v2578
    %v2647 = vunpack.c.l.b16 %v2579
    %v2648 = vunpack.c.l.b16 %v2580
    %v2649 = vunpack.c.l.b16 %v2581
    %v2650 = vunpack.c.l.b16 %v2582
    %v2651 = vunpack.c.l.b16 %v2583
    %v2652 = vunpack.c.l.b16 %v2584
    %v2653 = vunpack.c.l.b16 %v2585
    %v2654 = vunpack.c.l.b16 %v2586
    %v2655 = vunpack.c.l.b16 %v2587
    %v2656 = vunpack.c.l.b16 %v2588
    %v2657 = vunpack.c.l.b16 %v2589
    %v2658 = vunpack.c.l.b16 %v2590
    %v2659 = vunpack.c.l.b16 %v2591
    %v2660 = vunpack.c.l.b16 %v2592
    %v2661 = vunpack.c.l.b16 %v2593
    %v2662 = vunpack.c.l.b16 %v2594
    %v2663 = vunpack.c.l.b16 %v2595
    %v2664 = vunpack.c.l.b16 %v2596
    %v2665 = vunpack.c.l.b16 %v2597
    %v2666 = vunpack.c.l.b16 %v2598
    %v2667 = vunpack.c.l.b16 %v2599
    %v2668 = vunpack.c.l.b16 %v2600
    %v2669 = vunpack.c.l.b16 %v2601
    %v2670 = vunpack.c.l.b16 %v2602
    %v2671 = vunpack.c.l.b16 %v2603
    %v2672 = vunpack.c.l.b16 %v2604
    %v2673 = vunpack.c.l.b16 %v2605
    %v2674 = vpack.c.b16 %v2643, %v2642
    %v2675 = vpack.c.b16 %v2645, %v2644
    %v2676 = vpack.c.b16 %v2647, %v2646
    %v2677 = vpack.c.b16 %v2649, %v2648
    %v2678 = vpack.c.b16 %v2651, %v2650
    %v2679 = vpack.c.b16 %v2653, %v2652
    %v2680 = vpack.c.b16 %v2655, %v2654
    %v2681 = vpack.c.b16 %v2657, %v2656
    %v2682 = vpack.c.b16 %v2659, %v2658
    %v2683 = vpack.c.b16 %v2661, %v2660
    %v2684 = vpack.c.b16 %v2663, %v2662
    %v2685 = vpack.c.b16 %v2665, %v2664
    %v2686 = vpack.c.b16 %v2667, %v2666
    %v2687 = vpack.c.b16 %v2669, %v2668
    %v2688 = vpack.c.b16 %v2671, %v2670
    %v2689 = vpack.c.b16 %v2673, %v2672
    %2706 = vmatpush.bf16.msra.mxu0 %v2681
    %2707 = vmatpush.bf16.msra.mxu0 %v2680
    %2708 = vmatpush.bf16.msra.mxu0 %v2679
    %2709 = vmatpush.bf16.msra.mxu0 %v2678
    %2710 = vmatpush.bf16.msra.mxu0 %v2677
    %2711 = vmatpush.bf16.msra.mxu0 %v2676
    %2712 = vmatpush.bf16.msra.mxu0 %v2675
    %2713 = vmatpush.bf16.msra.mxu0 %v2674
    %2714 = vmatmul.bf16.gmra.mxu0 %v2572
    %v2715 = vpop.f32.mrf.mxu0
    %v2716 = vadd.f32 %v2608, %v2715
    %v2717 = vpop.f32.mrf.mxu0
    %2718 = vdwg.mxu0
    %2719 = vmatpush.bf16.msra.mxu0 %v2689
    %2720 = vmatpush.bf16.msra.mxu0 %v2688
    %2721 = vmatpush.bf16.msra.mxu0 %v2687
    %2722 = vmatpush.bf16.msra.mxu0 %v2686
    %2723 = vmatpush.bf16.msra.mxu0 %v2685
    %2724 = vmatpush.bf16.msra.mxu0 %v2684
    %2725 = vmatpush.bf16.msra.mxu0 %v2683
    %2726 = vmatpush.bf16.msra.mxu0 %v2682
    %2727 = vmatmul.bf16.gmra.mxu0 %v2573
    %v2728 = vpop.f32.mrf.mxu0
    %v2729 = vadd.f32 %v2716, %v2728
    %v2730 = vpop.f32.mrf.mxu0
    %2731 = vdwg.mxu0
    %v2732 = vmax.f32 %v2729, 0.0
    %v2733 = vld [vmem:[%s7] sm:$0x1]
    %v2735 = vperm.slane %v2733, 0
    %v2737 = vmul.f32 %v2732, %v2735
    %2738 = vadd.xlane.f32.xlu0 %v2737
    %v2739 = vpop.xlane.xlu0 %2738
    %v2740 = vld [vmem:[#allocation2] sm:$0x1]
    %v2742 = vperm.slane %v2740, 0
    %v2744 = vadd.f32 %v2739, %v2742
    %vm2745 = vcmask 7168
    %2746 = vst.msk [vmem:[%s9] sm:$0xff] %vm2745, %v2744
    // Predicated region
    $region58: #{robust_gap_predictor.1} parent=1 // pred_check
      _
    $region59: #{robust_gap_predictor.1} parent=1 // pred_check_branch
      %2748 = sbr.rel (0) target = $region61
    $region60: #{robust_gap_predictor.1} parent=1 // pred_region
      _
    $region61: #{robust_gap_predictor.1} parent=1 // pred_fallthru
      _
    // Predicated region
    $region62: #{robust_gap_predictor.1} parent=1 // pred_check
      _
    $region63: #{robust_gap_predictor.1} parent=1 // pred_check_branch
      %2750 = sbr.rel (0) target = $region65
    $region64: #{robust_gap_predictor.1} parent=1 // pred_region
      _
    $region65: #{robust_gap_predictor.1} parent=1 // pred_fallthru
      _
    %2751 = vsyncpa [#allocation4], 1
    %2752 = vsyncpa [#allocation6], 1
    %2753 = vsyncpa [#allocation9], 1

</llo_original>
